<compile_context>
chip_gen: v7x
topology: tpu7x:2x2x1
jax: 0.10.0
libtpu: 0.0.40
codegen_flags: <defaults>
</compile_context>

<pallas_src>
import jax
import jax.numpy as jnp
import numpy as np
from jax.experimental import pallas as pl
from jax.experimental.pallas import tpu as pltpu


def _round_up(x, m):
    return ((x + m - 1) // m) * m


def _vmem_cap_bytes():
    """Per-TensorCore VMEM capacity (64 MiB on v7x, 128 MiB on v5e/v6e)."""
    try:
        info = pltpu.get_tpu_info()
        cap = int(getattr(info, "vmem_capacity_bytes", 64 << 20))
        if cap <= 0:
            cap = 64 << 20
    except Exception:
        cap = 64 << 20
    return cap


def _choose_vocab_tiling(V, tile_v):
    """Lane-dense vocab tiles; even tile count so v7x's 2 TCs split the stream."""
    if V <= 256:
        return V, V, 1                      # single full-array block, no padding
    nt = max(2, pl.cdiv(V, tile_v))
    if nt % 2:
        nt += 1                             # even number of tiles (v7x megacore)
    tv = _round_up(pl.cdiv(V, nt), 128)
    return tv, tv * nt, nt


def _choose_gate_tiling(H4, tile_g):
    """Lane-aligned tiles of the fused (E+3H, 4H) gate weight (streamed in-core)."""
    if H4 % 128 != 0 or H4 <= 128 or tile_g is None:
        return H4, 1
    tg = min(_round_up(tile_g, 128), H4)
    while H4 % tg:
        tg -= 128
    return tg, H4 // tg


# ----------------------------------------------------------------------------
# One-time per-model prep (hoisted out of the per-step path)
# ----------------------------------------------------------------------------
def prepare_params(params, *, tile_v=2048, tile_g=1024):
    f32, bf16 = jnp.float32, jnp.bfloat16
    E = params["w_attn_x"].shape[0]
    H = params["w_hh"].shape[0]
    L = params["b_attn"].shape[-1]
    V = params["b_gen"].shape[-1]
    H4 = 4 * H

    TV, Vp, NT = _choose_vocab_tiling(V, tile_v)
    TG, NG = _choose_gate_tiling(H4, tile_g)

    # fused attention weight: [x ; h0] @ (E+H, L)
    w_attn_cat = jnp.concatenate(
        [params["w_attn_x"], params["w_attn_h"]], axis=0).astype(bf16)
    # fused LSTM gate weight: [x ; sel ; att ; h0] @ (E+3H, 4H), biases merged
    w_gate_cat = jnp.concatenate(
        [params["w_ih_x"], params["w_ih_s"], params["w_ih_a"], params["w_hh"]],
        axis=0).astype(bf16)
    b_gates = (params["b_ih"] + params["b_hh"]).astype(f32)

    w_gen = params["w_gen"].astype(bf16)
    b_gen = params["b_gen"].astype(f32)
    if Vp != V:
        w_gen = jnp.pad(w_gen, ((0, 0), (0, Vp - V)))
        b_gen = jnp.pad(b_gen, ((0, 0), (0, Vp - V)))

    arrays = dict(
        w_attn_cat=w_attn_cat, b_attn=params["b_attn"].astype(f32),
        w_gate_cat=w_gate_cat, b_gates=b_gates,
        w_gen=w_gen, b_gen=b_gen,
    )
    meta = dict(V=V, E=E, H=H, L=L, Vp=Vp, TV=TV, NT=NT, TG=TG, NG=NG)
    return arrays, meta


# Once per sequence: enc -> bf16 and tanh(copy_layer(enc)).T (constant per seq).
def prepare_encoder(params, encoder_outputs):
    enc_f32 = encoder_outputs.astype(jnp.float32)
    copy_projT = jnp.tanh(enc_f32 @ params["w_copy"] + params["b_copy"]
                          ).T.astype(jnp.bfloat16)                 # (H, L)
    return encoder_outputs.astype(jnp.bfloat16), copy_projT


# ----------------------------------------------------------------------------
# Jitted decode step builder (kernels close over static sizes)
# ----------------------------------------------------------------------------
def build_copy_decoder_step(meta):
    f32, bf16 = jnp.float32, jnp.bfloat16
    V, E, H, L = meta["V"], meta["E"], meta["H"], meta["L"]
    Vp, TV, NT = meta["Vp"], meta["TV"], meta["NT"]
    TG, NG = meta["TG"], meta["NG"]
    H4 = 4 * H

    cap = max(_vmem_cap_bytes() - (8 << 20), 16 << 20)   # honor v7x's 64 MiB/TC

    # ---- core kernel: attention + selective read + fused LSTM + copy score ----
    def core_kernel(flag_ref,                       # SMEM (1,) int32 (prefetch)
                    x_ref, h0_ref, c0_ref,          # (1,E) (1,H) (1,H) f32
                    enc_ref,                        # (L,H) bf16
                    pcopy_ref, mask_ref,            # (1,L) f32
                    cprojT_ref,                     # (H,L) bf16
                    wattn_ref, battn_ref,           # (E+H,L) bf16, (1,L) f32
                    wcat_ref, bgate_ref,            # (E+3H,TG) bf16, (1,TG) f32
                    h1_ref, c1_ref, cscore_ref,     # outputs
                    xcat_sc, gates_sc):             # scratch (1,E+3H) f32, (1,4H) f32
        g = pl.program_id(0)

        @pl.when(g == 0)
        def _init():
            # [x ; selective_read=0 ; attentive_read=0 ; h0]
            xcat_sc[...] = jnp.concatenate(
                [x_ref[...], jnp.zeros((1, 2 * H), f32), h0_ref[...]], axis=-1)

        @pl.when((g == 0) & (flag_ref[0] != 0))      # prev_word is not None
        def _attend():
            xh = jnp.concatenate([x_ref[...], h0_ref[...]], axis=-1).astype(bf16)
            logits = (jnp.dot(xh, wattn_ref[...], preferred_element_type=f32)
                      + battn_ref[...])                              # (1, L)
            m = jnp.max(logits, axis=-1, keepdims=True)
            e = jnp.exp(logits - m)
            attn_w = e * pl.reciprocal(jnp.sum(e, axis=-1, keepdims=True),
                                       approx=False)
            att = jnp.dot(attn_w.astype(bf16), enc_ref[...],
                          preferred_element_type=f32)                # (1, H)

            pc = pcopy_ref[...] * mask_ref[...]                      # (1, L)
            s = jnp.sum(pc, axis=-1, keepdims=True)
            pc = pc * jnp.where(s > 0.0, pl.reciprocal(s, approx=False), 1.0)
            sel = jnp.dot(pc.astype(bf16), enc_ref[...],
                          preferred_element_type=f32)                # (1, H)

            # TODO(synk): for H not a multiple of 128 these lane slices are
            # masked stores; pad H (or use gate-major packing) to make them
            # aligned selects at large H.
            xcat_sc[:, E:E + H] = sel
            xcat_sc[:, E + H:E + 2 * H] = att

        # one fused gate dot per streamed weight tile (replaces 5 separate dots)
        chunk = (jnp.dot(xcat_sc[...].astype(bf16), wcat_ref[...],
                         preferred_element_type=f32) + bgate_ref[...])
        if NG == 1:
            gates_sc[...] = chunk
        else:
            off = pl.multiple_of(g * TG, 128)
            gates_sc[:, pl.ds(off, TG)] = chunk

        @pl.when(g == NG - 1)
        def _finalize():
            gates = gates_sc[...]
            i_g = jax.nn.sigmoid(gates[:, 0 * H:1 * H])
            f_g = jax.nn.sigmoid(gates[:, 1 * H:2 * H])
            g_g = jnp.tanh(gates[:, 2 * H:3 * H])
            o_g = jax.nn.sigmoid(gates[:, 3 * H:4 * H])
            c1 = f_g * c0_ref[...] + i_g * g_g
            h1 = o_g * jnp.tanh(c1)
            h1_ref[...] = h1
            c1_ref[...] = c1
            cscore_ref[...] = jnp.dot(h1.astype(bf16), cprojT_ref[...],
                                      preferred_element_type=f32)    # (1, L)

    const2 = lambda g, flag: (0, 0)
    core_grid = pltpu.PrefetchScalarGridSpec(
        num_scalar_prefetch=1,
        grid=(NG,),
        in_specs=[
            pl.BlockSpec((1, E), const2),                            # x
            pl.BlockSpec((1, H), const2),                            # h0
            pl.BlockSpec((1, H), const2),                            # c0
            pl.BlockSpec((L, H), const2),                            # enc (bf16)
            pl.BlockSpec((1, L), const2),                            # prev copy probs
            pl.BlockSpec((1, L), const2),                            # unused_words mask
            pl.BlockSpec((H, L), const2),                            # copy_projT
            pl.BlockSpec((E + H, L), const2),                        # w_attn_cat
            pl.BlockSpec((1, L), const2),                            # b_attn
            pl.BlockSpec((E + 3 * H, TG), lambda g, flag: (0, g)),   # gate weight tile
            pl.BlockSpec((1, TG), lambda g, flag: (0, g)),           # gate bias tile
        ],
        out_specs=(
            pl.BlockSpec((1, H), const2),
            pl.BlockSpec((1, H), const2),
            pl.BlockSpec((1, L), const2),
        ),
        scratch_shapes=[
            pltpu.VMEM((1, E + 3 * H), f32),     # fused LSTM input row
            pltpu.VMEM((1, H4), f32),            # gate accumulator
        ],
    )

    core_resident = (
        4 * (E + 2 * H)                          # x, h0, c0
        + 2 * L * H + 2 * H * L                  # enc, copy_projT (bf16)
        + 4 * 2 * L                              # pcopy, mask
        + 2 * (E + H) * L + 4 * L                # w_attn_cat, b_attn
        + 2 * (2 * (E + 3 * H) * TG + 4 * TG)    # double-buffered gate tiles
        + 4 * (2 * H + L)                        # outputs
        + 4 * (E + 3 * H) + 4 * H4               # scratch
    )
    core_vmem = int(min(max(2 * core_resident + (2 << 20), 16 << 20), cap))
    core_cost = pl.CostEstimate(
        flops=int(2 * ((E + H) * L + 2 * L * H + (E + 3 * H) * H4 + H * L)),
        transcendentals=int(L + 5 * H),
        bytes_accessed=int(
            4 * (E + 2 * H + 3 * L + H4)
            + 2 * (2 * L * H + (E + H) * L + (E + 3 * H) * H4)
            + 4 * (2 * H + L)),
    )

    # ---- generate-score kernel: h1 @ w_gen, vocab-tiled, megacore-parallel ----
    def gen_kernel(h1_ref, wgen_ref, bgen_ref, gen_ref):
        gen_ref[...] = (jnp.dot(h1_ref[...].astype(bf16), wgen_ref[...],
                                preferred_element_type=f32) + bgen_ref[...])

    gen_vmem = int(min(max(2 * (2 * H * TV + 8 * TV + 4 * H) + (2 << 20),
                           16 << 20), cap))
    gen_cost = pl.CostEstimate(
        flops=int(2 * H * Vp),
        transcendentals=0,
        bytes_accessed=int(2 * H * Vp + 8 * Vp + 4 * H),
    )

    @jax.jit
    def step(arrays, x, enc_b, copy_projT, sent_ids, sent_len, prev_word, flag,
             prev_probs, h0, c0):
        x2d = x.reshape(1, E).astype(f32)
        h0_2d = h0.reshape(1, H).astype(f32)
        c0_2d = c0.reshape(1, H).astype(f32)
        pcopy = prev_probs.reshape(1, V + L)[:, V:].astype(f32)

        # _get_copy_probs "unused_words" mask, built fully traced (no retracing
        # across sentence lengths / prev_word values).  Padded sentence ids use
        # a negative sentinel (-2): safe because real token ids are >= 0 and
        # padded positions are excluded by (pos < sent_len - 1) anyway.
        pos = jnp.arange(L, dtype=jnp.int32)
        keep = (pos >= 1) & (pos < sent_len - 1) & (sent_ids != prev_word)
        mask = keep.astype(f32)[None, :]

        flag_s = flag.reshape(1).astype(jnp.int32)

        h1, c1, copy_score = pl.pallas_call(
            core_kernel,
            out_shape=(jax.ShapeDtypeStruct((1, H), f32),
                       jax.ShapeDtypeStruct((1, H), f32),
                       jax.ShapeDtypeStruct((1, L), f32)),
            grid_spec=core_grid,
            compiler_params=pltpu.CompilerParams(
                dimension_semantics=("arbitrary",),
                vmem_limit_bytes=core_vmem),
            cost_estimate=core_cost,
        )(flag_s, x2d, h0_2d, c0_2d, enc_b, pcopy, mask, copy_projT,
          arrays["w_attn_cat"], arrays["b_attn"],
          arrays["w_gate_cat"], arrays["b_gates"])

        gen = pl.pallas_call(
            gen_kernel,
            out_shape=jax.ShapeDtypeStruct((1, Vp), f32),
            grid=(NT,),
            in_specs=[pl.BlockSpec((1, H), lambda j: (0, 0)),
                      pl.BlockSpec((H, TV), lambda j: (0, j)),
                      pl.BlockSpec((1, TV), lambda j: (0, j))],
            out_specs=pl.BlockSpec((1, TV), lambda j: (0, j)),
            compiler_params=pltpu.CompilerParams(
                dimension_semantics=("parallel",),
                vmem_limit_bytes=gen_vmem),
            cost_estimate=gen_cost,
        )(h1, arrays["w_gen"], arrays["b_gen"])

        # joint softmax over [generate ; copy] — tiny (1, V+L) op, kept in XLA
        score = jnp.concatenate([gen[:, :V], copy_score], axis=1)
        probs = jax.nn.softmax(score, axis=1)
        return (probs.reshape(1, 1, V + L),
                (h1.reshape(1, 1, H), c1.reshape(1, 1, H)))

    return step


# ----------------------------------------------------------------------------
# Convenience wrapper mirroring CopyDecoder.forward (Python prev_word/sentence)
# ----------------------------------------------------------------------------
def copy_decoder_forward(step_fn, arrays, meta, inp, enc_prepped, prev_word,
                         sentence, prev_probs, hidden):
    enc_b, copy_projT = enc_prepped
    L = meta["L"]
    sent = np.full((L,), -2, dtype=np.int32)       # -2 pad sentinel (ids >= 0)
    n = min(len(sentence), L)
    sent[:n] = np.asarray(sentence[:n], dtype=np.int32)
    sent_len = jnp.int32(len(sentence))
    if prev_word is None:
        flag, pw = jnp.int32(0), jnp.int32(-1)
    else:
        flag, pw = jnp.int32(1), jnp.int32(int(prev_word))
    h0, c0 = hidden
    return step_fn(arrays, inp, enc_b, copy_projT, jnp.asarray(sent),
                   sent_len, pw, flag, prev_probs, h0, c0)


# ----------------------------------------------------------------------------
# Pure-JAX/numpy f32 reference (same math, for a sanity check)
# ----------------------------------------------------------------------------
def copy_decoder_reference(params, inp, enc, prev_word, sentence, prev_probs, hidden):
    V = params["b_gen"].shape[-1]
    H = params["w_hh"].shape[0]
    L = enc.shape[0]
    h0 = hidden[0].reshape(1, H)
    c0 = hidden[1].reshape(1, H)
    x = inp.reshape(1, -1)

    if prev_word is None:
        selective = jnp.zeros((1, H), jnp.float32)
        attentive = jnp.zeros((1, H), jnp.float32)
    else:
        logits = x @ params["w_attn_x"] + h0 @ params["w_attn_h"] + params["b_attn"]
        attentive = jax.nn.softmax(logits, axis=1) @ enc
        pc = np.array(prev_probs.reshape(V + L)[V:])
        mask = np.ones((L,), np.float32)
        mask[0] = 0.0
        mask[len(sentence) - 1:] = 0.0
        for idx in range(1, len(sentence)):
            if sentence[idx] == prev_word:
                mask[idx] = 0.0
        pc = pc * mask
        s = pc.sum()
        if s > 0:
            pc = pc / s
        selective = jnp.asarray(pc).reshape(1, L) @ enc

    gates = (x @ params["w_ih_x"] + selective @ params["w_ih_s"]
             + attentive @ params["w_ih_a"] + params["b_ih"]
             + h0 @ params["w_hh"] + params["b_hh"])
    i_g = jax.nn.sigmoid(gates[:, :H])
    f_g = jax.nn.sigmoid(gates[:, H:2 * H])
    g_g = jnp.tanh(gates[:, 2 * H:3 * H])
    o_g = jax.nn.sigmoid(gates[:, 3 * H:])
    c1 = f_g * c0 + i_g * g_g
    h1 = o_g * jnp.tanh(c1)

    gen = h1 @ params["w_gen"] + params["b_gen"]
    copy_proj = jnp.tanh(enc @ params["w_copy"] + params["b_copy"])
    copy_score = (copy_proj @ h1.T).T
    score = jnp.concatenate([gen, copy_score], axis=1)
    probs = jax.nn.softmax(score, axis=1)
    return probs.reshape(1, 1, V + L), (h1.reshape(1, 1, H), c1.reshape(1, 1, H))


# ----------------------------------------------------------------------------
# Deterministic parameter init (PyTorch Linear/LSTM shapes, pre-transposed)
# ----------------------------------------------------------------------------
def init_params(key, vocab_size, embed_size, hidden_size, max_length):
    V, E, H, L = vocab_size, embed_size, hidden_size, max_length
    ks = jax.random.split(key, 10)
    n = lambda k, shape: (0.1 * jax.random.normal(k, shape)).astype(jnp.float32)
    # nn.Linear(2H, L): weight (L, 2H) -> transposed & split (requires E == H)
    w_attn = n(ks[0], (E + H, L))
    # nn.LSTM(E + 2H, H): W_ih (4H, E+2H), W_hh (4H, H) -> transposed & split
    w_ih = n(ks[1], (E + 2 * H, 4 * H))
    return {
        "w_attn_x": w_attn[:E], "w_attn_h": w_attn[E:], "b_attn": n(ks[2], (1, L)),
        "w_ih_x": w_ih[:E], "w_ih_s": w_ih[E:E + H], "w_ih_a": w_ih[E + H:],
        "b_ih": n(ks[3], (1, 4 * H)),
        "w_hh": n(ks[4], (H, 4 * H)), "b_hh": n(ks[5], (1, 4 * H)),
        "w_gen": n(ks[6], (H, V)), "b_gen": n(ks[7], (1, V)),
        "w_copy": n(ks[8], (H, H)), "b_copy": n(ks[9], (1, H)),
    }


if __name__ == "__main__":
    # small shapes chosen so both multi-tile paths are exercised:
    #   V=512 -> 2 vocab tiles of 256; H=64 with tile_g=128 -> 2 gate tiles.
    VOCAB, EMBED, HIDDEN, MAX_LEN = 512, 64, 64, 16   # embed == hidden (attn shape)

    key = jax.random.PRNGKey(0)
    kp, k1, k2, k3, k4, k5 = jax.random.split(key, 6)
    params = init_params(kp, VOCAB, EMBED, HIDDEN, MAX_LEN)

    # one-time prep: per-model (weights) and per-sequence (encoder) — hoisted
    arrays, meta = prepare_params(params, tile_v=2048, tile_g=128)
    step_fn = build_copy_decoder_step(meta)
    enc_f32 = jax.random.normal(k2, (MAX_LEN, HIDDEN), jnp.float32)
    enc_prepped = prepare_encoder(params, enc_f32)

    inp = jax.random.normal(k1, (EMBED,), jnp.float32)
    h0 = jax.random.normal(k3, (1, 1, HIDDEN), jnp.float32)
    c0 = jax.random.normal(k4, (1, 1, HIDDEN), jnp.float32)
    prev_probs = jax.nn.softmax(
        jax.random.normal(k5, (1, 1, VOCAB + MAX_LEN), jnp.float32), axis=2)
    sentence = [3, 7, 2, 7, 5, 1]          # python token list, len <= MAX_LEN
    prev_word = 7

    # prev_word present (attention + selective read active)
    probs, (h1, c1) = copy_decoder_forward(
        step_fn, arrays, meta, inp, enc_prepped, prev_word, sentence,
        prev_probs, (h0, c0))
    jax.block_until_ready((probs, h1, c1))

    # prev_word is None (skipped via pl.when; same trace, flag=0)
    probs0, (h10, c10) = copy_decoder_forward(
        step_fn, arrays, meta, inp, enc_prepped, None, sentence,
        prev_probs, (h0, c0))
    jax.block_until_ready((probs0, h10, c10))

    # sanity-check against the pure-JAX f32 reference (kernels stream bf16 weights)
    for pw, (p, h, c) in [(prev_word, (probs, h1, c1)), (None, (probs0, h10, c10))]:
        rp, (rh, rc) = copy_decoder_reference(
            params, inp, enc_f32, pw, sentence, prev_probs, (h0, c0))
        assert np.allclose(np.asarray(h), np.asarray(rh), atol=2e-2, rtol=2e-2)
        assert np.allclose(np.asarray(c), np.asarray(rc), atol=2e-2, rtol=2e-2)
        assert np.allclose(np.asarray(p), np.asarray(rp), atol=2e-3, rtol=2e-2)
        assert abs(float(np.asarray(p).sum()) - 1.0) < 1e-3

    print("KERNEL_OK")
</pallas_src>

<mosaic_0001>
module attributes {stable_mosaic.version = 11 : i64} {
  func.func @gen_kernel(%arg0: i32, %arg1: memref<1x64xf32, #tpu.memory_space<vmem>>, %arg2: memref<64x256xbf16, #tpu.memory_space<vmem>>, %arg3: memref<1x256xf32, #tpu.memory_space<vmem>>, %arg4: memref<1x256xf32, #tpu.memory_space<vmem>>) attributes {dimension_semantics = [#tpu.dimension_semantics<parallel>], iteration_bounds = array<i64: 2>, scalar_prefetch = 0 : i64, scratch_operands = 0 : i64, tpu.core_type = #tpu.core_type<tc>, window_params = [{pipeline_mode = #tpu.pipeline_mode<synchronous>, transform_indices = @transform_0, window_bounds = array<i64: 1, 64>}, {transform_indices = @transform_1, window_bounds = array<i64: 64, 256>}, {transform_indices = @transform_2, window_bounds = array<i64: 1, 256>}, {transform_indices = @transform_3, window_bounds = array<i64: 1, 256>}]} {
    %c0 = arith.constant 0 : index
    %c0_0 = arith.constant 0 : index
    %0 = vector.load %arg1[%c0, %c0_0] : memref<1x64xf32, #tpu.memory_space<vmem>>, vector<1x64xf32>
    %1 = arith.truncf %0 : vector<1x64xf32> to vector<1x64xbf16>
    %c0_1 = arith.constant 0 : index
    %c0_2 = arith.constant 0 : index
    %2 = vector.load %arg2[%c0_1, %c0_2] : memref<64x256xbf16, #tpu.memory_space<vmem>>, vector<64x256xbf16>
    %cst = arith.constant dense<0.000000e+00> : vector<1x256xf32>
    %3 = tpu.matmul %1, %2, %cst {dimension_numbers = #tpu.dot_dimension_numbers<[1], [0], [0], [1], [0, 0, 1, 1], [], []>} : vector<1x64xbf16>, vector<64x256xbf16>, vector<1x256xf32> -> vector<1x256xf32>
    %c0_3 = arith.constant 0 : index
    %c0_4 = arith.constant 0 : index
    %4 = vector.load %arg3[%c0_3, %c0_4] : memref<1x256xf32, #tpu.memory_space<vmem>>, vector<1x256xf32>
    %5 = arith.addf %3, %4 : vector<1x256xf32>
    %c0_5 = arith.constant 0 : index
    %c0_6 = arith.constant 0 : index
    %6 = vector.load %arg4[%c0_5, %c0_6] : memref<1x256xf32, #tpu.memory_space<vmem>>, vector<1x256xf32>
    tpu.vector_store %arg4[%c0_5, %c0_6], %5 {strides = array<i32>} : memref<1x256xf32, #tpu.memory_space<vmem>>, vector<1x256xf32>,
    return
  }
  func.func @transform_0(%arg0: i32) -> (i32, i32) {
    %c0_i32 = arith.constant 0 : i32
    %c0_i32_0 = arith.constant 0 : i32
    %c0_i32_1 = arith.constant 0 : i32
    return %c0_i32, %c0_i32_0 : i32, i32
  }
  func.func @transform_1(%arg0: i32) -> (i32, i32) {
    %c0_i32 = arith.constant 0 : i32
    %c0_i32_0 = arith.constant 0 : i32
    return %c0_i32, %arg0 : i32, i32
  }
  func.func @transform_2(%arg0: i32) -> (i32, i32) {
    %c0_i32 = arith.constant 0 : i32
    %c0_i32_0 = arith.constant 0 : i32
    return %c0_i32, %arg0 : i32, i32
  }
  func.func @transform_3(%arg0: i32) -> (i32, i32) {
    %c0_i32 = arith.constant 0 : i32
    %c0_i32_0 = arith.constant 0 : i32
    return %c0_i32, %arg0 : i32, i32
  }
}

module attributes {stable_mosaic.version = 11 : i64} {
  func.func @core_kernel(%arg0: i32, %arg1: memref<1xi32, #tpu.memory_space<smem>>, %arg2: memref<1x64xf32, #tpu.memory_space<vmem>>, %arg3: memref<1x64xf32, #tpu.memory_space<vmem>>, %arg4: memref<1x64xf32, #tpu.memory_space<vmem>>, %arg5: memref<16x64xbf16, #tpu.memory_space<vmem>>, %arg6: memref<1x16xf32, #tpu.memory_space<vmem>>, %arg7: memref<1x16xf32, #tpu.memory_space<vmem>>, %arg8: memref<64x16xbf16, #tpu.memory_space<vmem>>, %arg9: memref<128x16xbf16, #tpu.memory_space<vmem>>, %arg10: memref<1x16xf32, #tpu.memory_space<vmem>>, %arg11: memref<256x128xbf16, #tpu.memory_space<vmem>>, %arg12: memref<1x128xf32, #tpu.memory_space<vmem>>, %arg13: memref<1x64xf32, #tpu.memory_space<vmem>>, %arg14: memref<1x64xf32, #tpu.memory_space<vmem>>, %arg15: memref<1x16xf32, #tpu.memory_space<vmem>>, %arg16: memref<1x256xf32, #tpu.memory_space<vmem>>, %arg17: memref<1x256xf32, #tpu.memory_space<vmem>>) attributes {dimension_semantics = [#tpu.dimension_semantics<arbitrary>], iteration_bounds = array<i64: 2>, scalar_prefetch = 1 : i64, scratch_operands = 2 : i64, tpu.core_type = #tpu.core_type<tc>, window_params = [{pipeline_mode = #tpu.pipeline_mode<synchronous>, transform_indices = @transform_0, window_bounds = array<i64: 1, 64>}, {pipeline_mode = #tpu.pipeline_mode<synchronous>, transform_indices = @transform_1, window_bounds = array<i64: 1, 64>}, {pipeline_mode = #tpu.pipeline_mode<synchronous>, transform_indices = @transform_2, window_bounds = array<i64: 1, 64>}, {pipeline_mode = #tpu.pipeline_mode<synchronous>, transform_indices = @transform_3, window_bounds = array<i64: 16, 64>}, {pipeline_mode = #tpu.pipeline_mode<synchronous>, transform_indices = @transform_4, window_bounds = array<i64: 1, 16>}, {pipeline_mode = #tpu.pipeline_mode<synchronous>, transform_indices = @transform_5, window_bounds = array<i64: 1, 16>}, {pipeline_mode = #tpu.pipeline_mode<synchronous>, transform_indices = @transform_6, window_bounds = array<i64: 64, 16>}, {pipeline_mode = #tpu.pipeline_mode<synchronous>, transform_indices = @transform_7, window_bounds = array<i64: 128, 16>}, {pipeline_mode = #tpu.pipeline_mode<synchronous>, transform_indices = @transform_8, window_bounds = array<i64: 1, 16>}, {transform_indices = @transform_9, window_bounds = array<i64: 256, 128>}, {transform_indices = @transform_10, window_bounds = array<i64: 1, 128>}, {pipeline_mode = #tpu.pipeline_mode<synchronous>, transform_indices = @transform_11, window_bounds = array<i64: 1, 64>}, {pipeline_mode = #tpu.pipeline_mode<synchronous>, transform_indices = @transform_12, window_bounds = array<i64: 1, 64>}, {pipeline_mode = #tpu.pipeline_mode<synchronous>, transform_indices = @transform_13, window_bounds = array<i64: 1, 16>}]} {
    %c0_i32 = arith.constant 0 : i32
    %0 = arith.cmpi eq, %arg0, %c0_i32 : i32
    %1 = arith.extui %0 : i1 to i32
    %c0_i32_0 = arith.constant 0 : i32
    %2 = arith.cmpi ne, %1, %c0_i32_0 : i32
    scf.if %2 {
      %c0_12 = arith.constant 0 : index
      %c0_13 = arith.constant 0 : index
      %22 = vector.load %arg2[%c0_12, %c0_13] : memref<1x64xf32, #tpu.memory_space<vmem>>, vector<1x64xf32>
      %cst_14 = arith.constant 0.000000e+00 : f32
      %23 = vector.broadcast %cst_14 : f32 to vector<1x128xf32>
      %c0_15 = arith.constant 0 : index
      %c0_16 = arith.constant 0 : index
      %24 = vector.load %arg3[%c0_15, %c0_16] : memref<1x64xf32, #tpu.memory_space<vmem>>, vector<1x64xf32>
      %25 = tpu.concatenate %22, %23, %24 in 1 : vector<1x64xf32>, vector<1x128xf32>, vector<1x64xf32> -> vector<1x256xf32>
      %c0_17 = arith.constant 0 : index
      %c0_18 = arith.constant 0 : index
      %26 = vector.load %arg16[%c0_17, %c0_18] : memref<1x256xf32, #tpu.memory_space<vmem>>, vector<1x256xf32>
      tpu.vector_store %arg16[%c0_17, %c0_18], %25 {strides = array<i32>} : memref<1x256xf32, #tpu.memory_space<vmem>>, vector<1x256xf32>,
    } else {
    }
    %c0_i32_1 = arith.constant 0 : i32
    %3 = arith.cmpi eq, %arg0, %c0_i32_1 : i32
    %c0 = arith.constant 0 : index
    %4 = memref.load %arg1[%c0] : memref<1xi32, #tpu.memory_space<smem>>
    %c0_i32_2 = arith.constant 0 : i32
    %5 = arith.cmpi ne, %4, %c0_i32_2 : i32
    %6 = arith.andi %3, %5 : i1
    %7 = arith.extui %6 : i1 to i32
    %c0_i32_3 = arith.constant 0 : i32
    %8 = arith.cmpi ne, %7, %c0_i32_3 : i32
    scf.if %8 {
      %c0_12 = arith.constant 0 : index
      %c0_13 = arith.constant 0 : index
      %22 = vector.load %arg2[%c0_12, %c0_13] : memref<1x64xf32, #tpu.memory_space<vmem>>, vector<1x64xf32>
      %c0_14 = arith.constant 0 : index
      %c0_15 = arith.constant 0 : index
      %23 = vector.load %arg3[%c0_14, %c0_15] : memref<1x64xf32, #tpu.memory_space<vmem>>, vector<1x64xf32>
      %24 = tpu.concatenate %22, %23 in 1 : vector<1x64xf32>, vector<1x64xf32> -> vector<1x128xf32>
      %25 = arith.truncf %24 : vector<1x128xf32> to vector<1x128xbf16>
      %c0_16 = arith.constant 0 : index
      %c0_17 = arith.constant 0 : index
      %26 = vector.load %arg9[%c0_16, %c0_17] : memref<128x16xbf16, #tpu.memory_space<vmem>>, vector<128x16xbf16>
      %cst_18 = arith.constant dense<0.000000e+00> : vector<1x16xf32>
      %27 = tpu.matmul %25, %26, %cst_18 {dimension_numbers = #tpu.dot_dimension_numbers<[1], [0], [0], [1], [0, 0, 1, 1], [], []>} : vector<1x128xbf16>, vector<128x16xbf16>, vector<1x16xf32> -> vector<1x16xf32>
      %c0_19 = arith.constant 0 : index
      %c0_20 = arith.constant 0 : index
      %28 = vector.load %arg10[%c0_19, %c0_20] : memref<1x16xf32, #tpu.memory_space<vmem>>, vector<1x16xf32>
      %29 = arith.addf %27, %28 : vector<1x16xf32>
      %cst_21 = arith.constant dense<0xFF800000> : vector<1xf32>
      %30 = vector.multi_reduction <maximumf>, %29, %cst_21 [1] : vector<1x16xf32> to vector<1xf32>
      %31 = vector.shape_cast %30 : vector<1xf32> to vector<1x1xf32>
      %32 = vector.broadcast %31 : vector<1x1xf32> to vector<1x16xf32>
      %33 = arith.subf %29, %32 : vector<1x16xf32>
      %34 = math.exp %33 : vector<1x16xf32>
      %cst_22 = arith.constant dense<0.000000e+00> : vector<1xf32>
      %35 = vector.multi_reduction <add>, %34, %cst_22 [1] : vector<1x16xf32> to vector<1xf32>
      %36 = vector.shape_cast %35 : vector<1xf32> to vector<1x1xf32>
      %37 = tpu.reciprocal %36 : vector<1x1xf32> -> vector<1x1xf32>
      %38 = vector.broadcast %37 : vector<1x1xf32> to vector<1x16xf32>
      %39 = arith.mulf %34, %38 : vector<1x16xf32>
      %40 = arith.truncf %39 : vector<1x16xf32> to vector<1x16xbf16>
      %c0_23 = arith.constant 0 : index
      %c0_24 = arith.constant 0 : index
      %41 = vector.load %arg5[%c0_23, %c0_24] : memref<16x64xbf16, #tpu.memory_space<vmem>>, vector<16x64xbf16>
      %cst_25 = arith.constant dense<0.000000e+00> : vector<1x64xf32>
      %42 = tpu.matmul %40, %41, %cst_25 {dimension_numbers = #tpu.dot_dimension_numbers<[1], [0], [0], [1], [0, 0, 1, 1], [], []>} : vector<1x16xbf16>, vector<16x64xbf16>, vector<1x64xf32> -> vector<1x64xf32>
      %c0_26 = arith.constant 0 : index
      %c0_27 = arith.constant 0 : index
      %43 = vector.load %arg6[%c0_26, %c0_27] : memref<1x16xf32, #tpu.memory_space<vmem>>, vector<1x16xf32>
      %c0_28 = arith.constant 0 : index
      %c0_29 = arith.constant 0 : index
      %44 = vector.load %arg7[%c0_28, %c0_29] : memref<1x16xf32, #tpu.memory_space<vmem>>, vector<1x16xf32>
      %45 = arith.mulf %43, %44 : vector<1x16xf32>
      %cst_30 = arith.constant dense<0.000000e+00> : vector<1xf32>
      %46 = vector.multi_reduction <add>, %45, %cst_30 [1] : vector<1x16xf32> to vector<1xf32>
      %47 = vector.shape_cast %46 : vector<1xf32> to vector<1x1xf32>
      %cst_31 = arith.constant 0.000000e+00 : f32
      %48 = vector.broadcast %cst_31 : f32 to vector<1x1xf32>
      %49 = arith.cmpf ogt, %47, %48 : vector<1x1xf32>
      %50 = tpu.reciprocal %47 : vector<1x1xf32> -> vector<1x1xf32>
      %cst_32 = arith.constant 1.000000e+00 : f32
      %51 = vector.broadcast %cst_32 : f32 to vector<1x1xf32>
      %52 = arith.select %49, %50, %51 : vector<1x1xi1>, vector<1x1xf32>
      %53 = vector.broadcast %52 : vector<1x1xf32> to vector<1x16xf32>
      %54 = arith.mulf %45, %53 : vector<1x16xf32>
      %55 = arith.truncf %54 : vector<1x16xf32> to vector<1x16xbf16>
      %c0_33 = arith.constant 0 : index
      %c0_34 = arith.constant 0 : index
      %56 = vector.load %arg5[%c0_33, %c0_34] : memref<16x64xbf16, #tpu.memory_space<vmem>>, vector<16x64xbf16>
      %cst_35 = arith.constant dense<0.000000e+00> : vector<1x64xf32>
      %57 = tpu.matmul %55, %56, %cst_35 {dimension_numbers = #tpu.dot_dimension_numbers<[1], [0], [0], [1], [0, 0, 1, 1], [], []>} : vector<1x16xbf16>, vector<16x64xbf16>, vector<1x64xf32> -> vector<1x64xf32>
      %c0_36 = arith.constant 0 : index
      %c64 = arith.constant 64 : index
      %58 = vector.load %arg16[%c0_36, %c64] : memref<1x256xf32, #tpu.memory_space<vmem>>, vector<1x64xf32>
      tpu.vector_store %arg16[%c0_36, %c64], %57 {strides = array<i32>} : memref<1x256xf32, #tpu.memory_space<vmem>>, vector<1x64xf32>,
      %c0_37 = arith.constant 0 : index
      %c128 = arith.constant 128 : index
      %59 = vector.load %arg16[%c0_37, %c128] : memref<1x256xf32, #tpu.memory_space<vmem>>, vector<1x64xf32>
      tpu.vector_store %arg16[%c0_37, %c128], %42 {strides = array<i32>} : memref<1x256xf32, #tpu.memory_space<vmem>>, vector<1x64xf32>,
    } else {
    }
    %c0_4 = arith.constant 0 : index
    %c0_5 = arith.constant 0 : index
    %9 = vector.load %arg16[%c0_4, %c0_5] : memref<1x256xf32, #tpu.memory_space<vmem>>, vector<1x256xf32>
    %10 = arith.truncf %9 : vector<1x256xf32> to vector<1x256xbf16>
    %c0_6 = arith.constant 0 : index
    %c0_7 = arith.constant 0 : index
    %11 = vector.load %arg11[%c0_6, %c0_7] : memref<256x128xbf16, #tpu.memory_space<vmem>>, vector<256x128xbf16>
    %cst = arith.constant dense<0.000000e+00> : vector<1x128xf32>
    %12 = tpu.matmul %10, %11, %cst {dimension_numbers = #tpu.dot_dimension_numbers<[1], [0], [0], [1], [0, 0, 1, 1], [], []>} : vector<1x256xbf16>, vector<256x128xbf16>, vector<1x128xf32> -> vector<1x128xf32>
    %c0_8 = arith.constant 0 : index
    %c0_9 = arith.constant 0 : index
    %13 = vector.load %arg12[%c0_8, %c0_9] : memref<1x128xf32, #tpu.memory_space<vmem>>, vector<1x128xf32>
    %14 = arith.addf %12, %13 : vector<1x128xf32>
    %c128_i32 = arith.constant 128 : i32
    %15 = arith.muli %arg0, %c128_i32 : i32
    %16 = tpu.assume_multiple %15, 128 : i32
    %c0_10 = arith.constant 0 : index
    %17 = arith.index_cast %16 : i32 to index
    %18 = vector.load %arg17[%c0_10, %17] : memref<1x256xf32, #tpu.memory_space<vmem>>, vector<1x128xf32>
    tpu.vector_store %arg17[%c0_10, %17], %14 {strides = array<i32>} : memref<1x256xf32, #tpu.memory_space<vmem>>, vector<1x128xf32>,
    %c1_i32 = arith.constant 1 : i32
    %19 = arith.cmpi eq, %arg0, %c1_i32 : i32
    %20 = arith.extui %19 : i1 to i32
    %c0_i32_11 = arith.constant 0 : i32
    %21 = arith.cmpi ne, %20, %c0_i32_11 : i32
    scf.if %21 {
      %c0_12 = arith.constant 0 : index
      %c0_13 = arith.constant 0 : index
      %22 = vector.load %arg17[%c0_12, %c0_13] : memref<1x256xf32, #tpu.memory_space<vmem>>, vector<1x256xf32>
      %23 = vector.extract_strided_slice %22 {offsets = [0, 0], sizes = [1, 64], strides = [1, 1]} : vector<1x256xf32> to vector<1x64xf32>
      %24 = arith.negf %23 : vector<1x64xf32>
      %25 = math.exp %24 : vector<1x64xf32>
      %cst_14 = arith.constant 1.000000e+00 : f32
      %26 = vector.broadcast %cst_14 : f32 to vector<1x64xf32>
      %27 = arith.addf %26, %25 : vector<1x64xf32>
      %28 = arith.divf %26, %27 : vector<1x64xf32>
      %29 = vector.extract_strided_slice %22 {offsets = [0, 64], sizes = [1, 64], strides = [1, 1]} : vector<1x256xf32> to vector<1x64xf32>
      %30 = arith.negf %29 : vector<1x64xf32>
      %31 = math.exp %30 : vector<1x64xf32>
      %cst_15 = arith.constant 1.000000e+00 : f32
      %32 = vector.broadcast %cst_15 : f32 to vector<1x64xf32>
      %33 = arith.addf %32, %31 : vector<1x64xf32>
      %34 = arith.divf %32, %33 : vector<1x64xf32>
      %35 = vector.extract_strided_slice %22 {offsets = [0, 128], sizes = [1, 64], strides = [1, 1]} : vector<1x256xf32> to vector<1x64xf32>
      %36 = math.tanh %35 : vector<1x64xf32>
      %37 = vector.extract_strided_slice %22 {offsets = [0, 192], sizes = [1, 64], strides = [1, 1]} : vector<1x256xf32> to vector<1x64xf32>
      %38 = arith.negf %37 : vector<1x64xf32>
      %39 = math.exp %38 : vector<1x64xf32>
      %cst_16 = arith.constant 1.000000e+00 : f32
      %40 = vector.broadcast %cst_16 : f32 to vector<1x64xf32>
      %41 = arith.addf %40, %39 : vector<1x64xf32>
      %42 = arith.divf %40, %41 : vector<1x64xf32>
      %c0_17 = arith.constant 0 : index
      %c0_18 = arith.constant 0 : index
      %43 = vector.load %arg4[%c0_17, %c0_18] : memref<1x64xf32, #tpu.memory_space<vmem>>, vector<1x64xf32>
      %44 = arith.mulf %34, %43 : vector<1x64xf32>
      %45 = arith.mulf %28, %36 : vector<1x64xf32>
      %46 = arith.addf %44, %45 : vector<1x64xf32>
      %47 = math.tanh %46 : vector<1x64xf32>
      %48 = arith.mulf %42, %47 : vector<1x64xf32>
      %c0_19 = arith.constant 0 : index
      %c0_20 = arith.constant 0 : index
      %49 = vector.load %arg13[%c0_19, %c0_20] : memref<1x64xf32, #tpu.memory_space<vmem>>, vector<1x64xf32>
      tpu.vector_store %arg13[%c0_19, %c0_20], %48 {strides = array<i32>} : memref<1x64xf32, #tpu.memory_space<vmem>>, vector<1x64xf32>,
      %c0_21 = arith.constant 0 : index
      %c0_22 = arith.constant 0 : index
      %50 = vector.load %arg14[%c0_21, %c0_22] : memref<1x64xf32, #tpu.memory_space<vmem>>, vector<1x64xf32>
      tpu.vector_store %arg14[%c0_21, %c0_22], %46 {strides = array<i32>} : memref<1x64xf32, #tpu.memory_space<vmem>>, vector<1x64xf32>,
      %51 = arith.truncf %48 : vector<1x64xf32> to vector<1x64xbf16>
      %c0_23 = arith.constant 0 : index
      %c0_24 = arith.constant 0 : index
      %52 = vector.load %arg8[%c0_23, %c0_24] : memref<64x16xbf16, #tpu.memory_space<vmem>>, vector<64x16xbf16>
      %cst_25 = arith.constant dense<0.000000e+00> : vector<1x16xf32>
      %53 = tpu.matmul %51, %52, %cst_25 {dimension_numbers = #tpu.dot_dimension_numbers<[1], [0], [0], [1], [0, 0, 1, 1], [], []>} : vector<1x64xbf16>, vector<64x16xbf16>, vector<1x16xf32> -> vector<1x16xf32>
      %c0_26 = arith.constant 0 : index
      %c0_27 = arith.constant 0 : index
      %54 = vector.load %arg15[%c0_26, %c0_27] : memref<1x16xf32, #tpu.memory_space<vmem>>, vector<1x16xf32>
      tpu.vector_store %arg15[%c0_26, %c0_27], %53 {strides = array<i32>} : memref<1x16xf32, #tpu.memory_space<vmem>>, vector<1x16xf32>,
    } else {
    }
    return
  }
  func.func @transform_0(%arg0: i32, %arg1: memref<1xi32, #tpu.memory_space<smem>>) -> (i32, i32) {
    %c0_i32 = arith.constant 0 : i32
    %c0_i32_0 = arith.constant 0 : i32
    %c0_i32_1 = arith.constant 0 : i32
    return %c0_i32, %c0_i32_0 : i32, i32
  }
  func.func @transform_1(%arg0: i32, %arg1: memref<1xi32, #tpu.memory_space<smem>>) -> (i32, i32) {
    %c0_i32 = arith.constant 0 : i32
    %c0_i32_0 = arith.constant 0 : i32
    %c0_i32_1 = arith.constant 0 : i32
    return %c0_i32, %c0_i32_0 : i32, i32
  }
  func.func @transform_2(%arg0: i32, %arg1: memref<1xi32, #tpu.memory_space<smem>>) -> (i32, i32) {
    %c0_i32 = arith.constant 0 : i32
    %c0_i32_0 = arith.constant 0 : i32
    %c0_i32_1 = arith.constant 0 : i32
    return %c0_i32, %c0_i32_0 : i32, i32
  }
  func.func @transform_3(%arg0: i32, %arg1: memref<1xi32, #tpu.memory_space<smem>>) -> (i32, i32) {
    %c0_i32 = arith.constant 0 : i32
    %c0_i32_0 = arith.constant 0 : i32
    %c0_i32_1 = arith.constant 0 : i32
    return %c0_i32, %c0_i32_0 : i32, i32
  }
  func.func @transform_4(%arg0: i32, %arg1: memref<1xi32, #tpu.memory_space<smem>>) -> (i32, i32) {
    %c0_i32 = arith.constant 0 : i32
    %c0_i32_0 = arith.constant 0 : i32
    %c0_i32_1 = arith.constant 0 : i32
    return %c0_i32, %c0_i32_0 : i32, i32
  }
  func.func @transform_5(%arg0: i32, %arg1: memref<1xi32, #tpu.memory_space<smem>>) -> (i32, i32) {
    %c0_i32 = arith.constant 0 : i32
    %c0_i32_0 = arith.constant 0 : i32
    %c0_i32_1 = arith.constant 0 : i32
    return %c0_i32, %c0_i32_0 : i32, i32
  }
  func.func @transform_6(%arg0: i32, %arg1: memref<1xi32, #tpu.memory_space<smem>>) -> (i32, i32) {
    %c0_i32 = arith.constant 0 : i32
    %c0_i32_0 = arith.constant 0 : i32
    %c0_i32_1 = arith.constant 0 : i32
    return %c0_i32, %c0_i32_0 : i32, i32
  }
  func.func @transform_7(%arg0: i32, %arg1: memref<1xi32, #tpu.memory_space<smem>>) -> (i32, i32) {
    %c0_i32 = arith.constant 0 : i32
    %c0_i32_0 = arith.constant 0 : i32
    %c0_i32_1 = arith.constant 0 : i32
    return %c0_i32, %c0_i32_0 : i32, i32
  }
  func.func @transform_8(%arg0: i32, %arg1: memref<1xi32, #tpu.memory_space<smem>>) -> (i32, i32) {
    %c0_i32 = arith.constant 0 : i32
    %c0_i32_0 = arith.constant 0 : i32
    %c0_i32_1 = arith.constant 0 : i32
    return %c0_i32, %c0_i32_0 : i32, i32
  }
  func.func @transform_9(%arg0: i32, %arg1: memref<1xi32, #tpu.memory_space<smem>>) -> (i32, i32) {
    %c0_i32 = arith.constant 0 : i32
    %c0_i32_0 = arith.constant 0 : i32
    return %c0_i32, %arg0 : i32, i32
  }
  func.func @transform_10(%arg0: i32, %arg1: memref<1xi32, #tpu.memory_space<smem>>) -> (i32, i32) {
    %c0_i32 = arith.constant 0 : i32
    %c0_i32_0 = arith.constant 0 : i32
    return %c0_i32, %arg0 : i32, i32
  }
  func.func @transform_11(%arg0: i32, %arg1: memref<1xi32, #tpu.memory_space<smem>>) -> (i32, i32) {
    %c0_i32 = arith.constant 0 : i32
    %c0_i32_0 = arith.constant 0 : i32
    %c0_i32_1 = arith.constant 0 : i32
    return %c0_i32, %c0_i32_0 : i32, i32
  }
  func.func @transform_12(%arg0: i32, %arg1: memref<1xi32, #tpu.memory_space<smem>>) -> (i32, i32) {
    %c0_i32 = arith.constant 0 : i32
    %c0_i32_0 = arith.constant 0 : i32
    %c0_i32_1 = arith.constant 0 : i32
    return %c0_i32, %c0_i32_0 : i32, i32
  }
  func.func @transform_13(%arg0: i32, %arg1: memref<1xi32, #tpu.memory_space<smem>>) -> (i32, i32) {
    %c0_i32 = arith.constant 0 : i32
    %c0_i32_0 = arith.constant 0 : i32
    %c0_i32_1 = arith.constant 0 : i32
    return %c0_i32, %c0_i32_0 : i32, i32
  }
}

</mosaic_0001>

<llo_original>
// kernel: step.3
$region0: #{step.3}
  #allocation0 [shape = 'u32[]', space=smem, size = 0x4, offset = 0x4, fixed_abs, tag = 'smem constant byte address 0x4 - core index']
  #allocation1 [shape = 'u32[144,128]{1,0:T(1,128)}', space=vmem, size = 0x12000, scoped, tag = 'internal scratch']
  %s0 = inlined_call_operand.vmem [shape: f32[1,64], index: 0, kind: input, shape index: {}]
  %s1 = inlined_call_operand.vmem [shape: bf16[64,512], index: 1, kind: input, shape index: {}]
  %s2 = inlined_call_operand.vmem [shape: f32[1,512], index: 2, kind: input, shape index: {}]
  %s3 = inlined_call_operand.vmem [shape: f32[1,512], index: 3, kind: output, shape index: {}]
  %s4 = sld [smem:[#allocation0]]
  $region83: #{step.3} parent=0
    _
  %s6 = ssub.s32 1, %s4
  %s7 = scalar_select 0, %s6, %s4
  $region1: #{step.3} parent=0
    #allocation2 [shape = 'u8[65536]{0}', space=vmem, size = 0x10000, scoped, tag = 'input window, operand 1']
    loop: start=0, step=1, limit=4
    $region2: #{step.3} parent=1 // loop_pre_header
      _
    $region3: #{step.3} parent=1 // loop_header
      %s9 = sphi 0, %s13
      %p10 = scmp.ge.s32.totalorder %s9, 4
      %s17 = sphi 0, %s17
      %s19 = sphi 0, %s17
      %s20 = sphi 0, %s19
      %s34 = sphi 0, %s20
      %s40 = sphi 0, %s42
      %s43 = sphi 0, %s40
      %s44 = sphi 0, %s43
      %s60 = sphi 0, %s44
      %s66 = sphi 0, %s68
      %s69 = sphi 0, %s66
      %s70 = sphi 0, %s69
      %s86 = sphi 0, %s70
      %s92 = sphi 0, %s94
      %s95 = sphi 0, %s92
      %s96 = sphi 0, %s95
      %s112 = sphi 0, %s96
    $region4: #{step.3} parent=1 // loop_header_branch
      %12 = sbr.rel (%p10) target = $region8
    $region5: #{step.3} parent=1 // loop_body
      %s14 = ssub.s32 %s9, 1
      %s15 = ssub.s32 %s9, 2
      %s16 = sadd.s32 %s9, 1
      %s18 = sadd.s32 %s17, 1
      %p21 = scmp.eq.s32.totalorder %s9, 1
      %p22 = scmp.ne.s32.totalorder %s17, %s19
      %p23 = scmp.eq.s32.totalorder %s9, 0
      %p24 = por %p22, %p23
      %p25 = scmp.ne.s32.totalorder %s17, %s19
      %p26 = scmp.eq.s32.totalorder %s14, 1
      %p27 = por %p25, %p26
      %p28 = scmp.ne.s32.totalorder %s19, %s20
      %p29 = scmp.eq.s32.totalorder %s14, 0
      %p30 = por %p28, %p29
      %p31 = scmp.ne.s32.totalorder %s19, %s20
      %p32 = scmp.eq.s32.totalorder %s15, 1
      %p33 = por %p31, %p32
      %p35 = scmp.ne.s32.totalorder %s20, %s34
      %p36 = scmp.eq.s32.totalorder %s15, 0
      %p37 = por %p35, %p36
      %s38 = ssub.s32 %s9, %s16
      %p39 = scmp.eq.s32.totalorder %s38, 0
      %s41 = sadd.s32 %s40, 1
      %s42 = scalar_select %p39, %s40, %s41
      %p45 = pneg %p39
      %p46 = scmp.eq.s32.totalorder %s9, 1
      %p47 = por %p45, %p46
      %p48 = scmp.ne.s32.totalorder %s40, %s43
      %p49 = scmp.eq.s32.totalorder %s9, 0
      %p50 = por %p48, %p49
      %p51 = scmp.ne.s32.totalorder %s40, %s43
      %p52 = scmp.eq.s32.totalorder %s14, 1
      %p53 = por %p51, %p52
      %p54 = scmp.ne.s32.totalorder %s43, %s44
      %p55 = scmp.eq.s32.totalorder %s14, 0
      %p56 = por %p54, %p55
      %p57 = scmp.ne.s32.totalorder %s43, %s44
      %p58 = scmp.eq.s32.totalorder %s15, 1
      %p59 = por %p57, %p58
      %p61 = scmp.ne.s32.totalorder %s44, %s60
      %p62 = scmp.eq.s32.totalorder %s15, 0
      %p63 = por %p61, %p62
      %s64 = ssub.s32 %s9, %s16
      %p65 = scmp.eq.s32.totalorder %s64, 0
      %s67 = sadd.s32 %s66, 1
      %s68 = scalar_select %p65, %s66, %s67
      %p71 = pneg %p65
      %p72 = scmp.eq.s32.totalorder %s9, 1
      %p73 = por %p71, %p72
      %p74 = scmp.ne.s32.totalorder %s66, %s69
      %p75 = scmp.eq.s32.totalorder %s9, 0
      %p76 = por %p74, %p75
      %p77 = scmp.ne.s32.totalorder %s66, %s69
      %p78 = scmp.eq.s32.totalorder %s14, 1
      %p79 = por %p77, %p78
      %p80 = scmp.ne.s32.totalorder %s69, %s70
      %p81 = scmp.eq.s32.totalorder %s14, 0
      %p82 = por %p80, %p81
      %p83 = scmp.ne.s32.totalorder %s69, %s70
      %p84 = scmp.eq.s32.totalorder %s15, 1
      %p85 = por %p83, %p84
      %p87 = scmp.ne.s32.totalorder %s70, %s86
      %p88 = scmp.eq.s32.totalorder %s15, 0
      %p89 = por %p87, %p88
      %s90 = ssub.s32 %s9, %s16
      %p91 = scmp.eq.s32.totalorder %s90, 0
      %s93 = sadd.s32 %s92, 1
      %s94 = scalar_select %p91, %s92, %s93
      %p97 = pneg %p91
      %p98 = scmp.eq.s32.totalorder %s9, 1
      %p99 = por %p97, %p98
      %p100 = scmp.ne.s32.totalorder %s92, %s95
      %p101 = scmp.eq.s32.totalorder %s9, 0
      %p102 = por %p100, %p101
      %p103 = scmp.ne.s32.totalorder %s92, %s95
      %p104 = scmp.eq.s32.totalorder %s14, 1
      %p105 = por %p103, %p104
      %p106 = scmp.ne.s32.totalorder %s95, %s96
      %p107 = scmp.eq.s32.totalorder %s14, 0
      %p108 = por %p106, %p107
      %p109 = scmp.ne.s32.totalorder %s95, %s96
      %p110 = scmp.eq.s32.totalorder %s15, 1
      %p111 = por %p109, %p110
      %p113 = scmp.ne.s32.totalorder %s96, %s112
      %p114 = scmp.eq.s32.totalorder %s15, 0
      %p115 = por %p113, %p114
      %p116 = scmp.le.s32.totalorder 1, %s9
      %p117 = scmp.lt.s32.totalorder %s9, 3
      %p118 = pnand %p116, %p117
      %p119 = pneg %p118
      // Predicated region
      $region9: #{step.3} parent=5 // pred_check
        _
      $region10: #{step.3} parent=5 // pred_check_branch
        %121 = sbr.rel (%p118) target = $region12
      $region11: #{step.3} parent=5 // pred_region
        %s122 = ssub.s32 %s9, 1
        // Predicated region
        $region13: #{step.3} parent=11 // pred_check
          %p123 = pneg %p30
        $region14: #{step.3} parent=11 // pred_check_branch
          %125 = sbr.rel (%p123) target = $region16
        $region15: #{step.3} parent=11 // pred_region
          _
        $region16: #{step.3} parent=11 // pred_fallthru
          _
      $region12: #{step.3} parent=5 // pred_fallthru
        _
      %p126 = scmp.lt.s32.totalorder %s9, 2
      // Predicated region
      $region17: #{step.3} parent=5 // pred_check
        %p127 = pneg %p126
      $region18: #{step.3} parent=5 // pred_check_branch
        %129 = sbr.rel (%p127) target = $region20
      $region19: #{step.3} parent=5 // pred_region
        // Predicated region
        $region21: #{step.3} parent=19 // pred_check
          %p130 = pneg %p50
        $region22: #{step.3} parent=19 // pred_check_branch
          %132 = sbr.rel (%p130) target = $region24
        $region23: #{step.3} parent=19 // pred_region
          %s133 = sand.u32 %s40, 1
          %s134 = sand.u32 %s40, 1
          %s135 = smul.addr %s134, 64
          %s136 = scalar_lea.vmem [#allocation2], %s135
          %s137 = smul.u32 2, %s9
          %s138 = smul.addr %s137, 4
          %s139 = scalar_lea.vmem %s1, %s138
          // Predicated region
          $region25: #{step.3} parent=23 // pred_check
            _
          $region26: #{step.3} parent=23 // pred_check_branch
            %141 = sbr.rel (0) target = $region28
          $region27: #{step.3} parent=23 // pred_region
            // Predicated region
            $region29: #{step.3} parent=27 // pred_check
              _
            $region30: #{step.3} parent=27 // pred_check_branch
              %143 = sbr.rel (0) target = $region32
            $region31: #{step.3} parent=27 // pred_region
              // Predicated region
              $region44: #{step.3} parent=31 // pred_check
                _
              $region45: #{step.3} parent=31 // pred_check_branch
                %172 = sbr.rel (0) target = $region47
              $region46: #{step.3} parent=31 // pred_region
                loop: start=0, step=1, limit=1
                $region48: #{step.3} parent=46 // loop_pre_header
                  _
                $region49: #{step.3} parent=46 // loop_header
                  %s174 = sphi 0, %s178
                  %p175 = scmp.ge.s32.totalorder %s174, 1
                  %s179 = sphi %s139, %s139
                  %s180 = sphi %s136, %s136
                $region50: #{step.3} parent=46 // loop_header_branch
                  %177 = sbr.rel (%p175) target = $region54
                $region51: #{step.3} parent=46 // loop_body
                  %v181 = vld [vmem:[%s179] sm:$0xff]
                  %182 = vst [vmem:[%s180] sm:$0xff] %v181
                  %v183 = vld [vmem:[%s179 + $0x10] sm:$0xff]
                  %184 = vst [vmem:[%s180 + $0x8] sm:$0xff] %v183
                  %v185 = vld [vmem:[%s179 + $0x20] sm:$0xff]
                  %186 = vst [vmem:[%s180 + $0x10] sm:$0xff] %v185
                  %v187 = vld [vmem:[%s179 + $0x30] sm:$0xff]
                  %188 = vst [vmem:[%s180 + $0x18] sm:$0xff] %v187
                  %v189 = vld [vmem:[%s179 + $0x40] sm:$0xff]
                  %190 = vst [vmem:[%s180 + $0x20] sm:$0xff] %v189
                  %v191 = vld [vmem:[%s179 + $0x50] sm:$0xff]
                  %192 = vst [vmem:[%s180 + $0x28] sm:$0xff] %v191
                  %v193 = vld [vmem:[%s179 + $0x60] sm:$0xff]
                  %194 = vst [vmem:[%s180 + $0x30] sm:$0xff] %v193
                  %v195 = vld [vmem:[%s179 + $0x70] sm:$0xff]
                  %196 = vst [vmem:[%s180 + $0x38] sm:$0xff] %v195
                $region52: #{step.3} parent=46 // loop_footer
                  %s178 = sadd.s32 1, %s174
                $region53: #{step.3} parent=46 // loop_footer_branch
                  %173 = sbr.rel target = $region49
                $region54: #{step.3} parent=46 // loop_exit
                  _
              $region47: #{step.3} parent=31 // pred_fallthru
                _
              // Predicated region
              $region55: #{step.3} parent=31 // pred_check
                _
              $region56: #{step.3} parent=31 // pred_check_branch
                %198 = sbr.rel target = $region58
              $region57: #{step.3} parent=31 // pred_region
                _
              $region58: #{step.3} parent=31 // pred_fallthru
                _
            $region32: #{step.3} parent=27 // pred_fallthru
              _
            // Predicated region
            $region33: #{step.3} parent=27 // pred_check
              _
            $region34: #{step.3} parent=27 // pred_check_branch
              %145 = sbr.rel target = $region36
            $region35: #{step.3} parent=27 // pred_region
              loop: start=0, step=1, limit=1
              $region37: #{step.3} parent=35 // loop_pre_header
                _
              $region38: #{step.3} parent=35 // loop_header
                %s148 = sphi 0, %s152
                %p149 = scmp.ge.s32.totalorder %s148, 1
                %s153 = sphi %s139, %s139
                %s154 = sphi %s136, %s136
              $region39: #{step.3} parent=35 // loop_header_branch
                %151 = sbr.rel (%p149) target = $region43
              $region40: #{step.3} parent=35 // loop_body
                %v155 = vld [vmem:[%s153] sm:$0xff]
                %156 = vst [vmem:[%s154] sm:$0xff] %v155
                %v157 = vld [vmem:[%s153 + $0x10] sm:$0xff]
                %158 = vst [vmem:[%s154 + $0x8] sm:$0xff] %v157
                %v159 = vld [vmem:[%s153 + $0x20] sm:$0xff]
                %160 = vst [vmem:[%s154 + $0x10] sm:$0xff] %v159
                %v161 = vld [vmem:[%s153 + $0x30] sm:$0xff]
                %162 = vst [vmem:[%s154 + $0x18] sm:$0xff] %v161
                %v163 = vld [vmem:[%s153 + $0x40] sm:$0xff]
                %164 = vst [vmem:[%s154 + $0x20] sm:$0xff] %v163
                %v165 = vld [vmem:[%s153 + $0x50] sm:$0xff]
                %166 = vst [vmem:[%s154 + $0x28] sm:$0xff] %v165
                %v167 = vld [vmem:[%s153 + $0x60] sm:$0xff]
                %168 = vst [vmem:[%s154 + $0x30] sm:$0xff] %v167
                %v169 = vld [vmem:[%s153 + $0x70] sm:$0xff]
                %170 = vst [vmem:[%s154 + $0x38] sm:$0xff] %v169
              $region41: #{step.3} parent=35 // loop_footer
                %s152 = sadd.s32 1, %s148
              $region42: #{step.3} parent=35 // loop_footer_branch
                %147 = sbr.rel target = $region38
              $region43: #{step.3} parent=35 // loop_exit
                _
            $region36: #{step.3} parent=27 // pred_fallthru
              _
          $region28: #{step.3} parent=23 // pred_fallthru
            _
          %199 = vnop
        $region24: #{step.3} parent=19 // pred_fallthru
          _
        // Predicated region
        $region59: #{step.3} parent=19 // pred_check
          %p200 = pneg %p76
        $region60: #{step.3} parent=19 // pred_check_branch
          %202 = sbr.rel (%p200) target = $region62
        $region61: #{step.3} parent=19 // pred_region
          %s203 = smul.u32 2, %s9
          %p204 = scmp.lt.s32.totalorder %s203, 3
          %s205 = scalar_select %p204, %s203, 3
          %s206 = scalar_lea.vmem %s2, %s205
          %s207 = smul.u32 2, %s9
        $region62: #{step.3} parent=19 // pred_fallthru
          _
      $region20: #{step.3} parent=5 // pred_fallthru
        _
      %p208 = scmp.le.s32.totalorder 1, %s9
      %p209 = scmp.lt.s32.totalorder %s9, 3
      %p210 = pnand %p208, %p209
      %p211 = pneg %p210
      // Predicated region
      $region63: #{step.3} parent=5 // pred_check
        _
      $region64: #{step.3} parent=5 // pred_check_branch
        %213 = sbr.rel (%p210) target = $region66
      $region65: #{step.3} parent=5 // pred_region
        %s214 = ssub.s32 %s9, 1
        %s215 = sand.u32 %s43, 1
        %s216 = sand.u32 %s43, 1
        %s217 = smul.addr %s216, 64
        %s218 = scalar_lea.vmem [#allocation2], %s217
        // Predicated region
        $region67: #{step.3} parent=65 // pred_check
          %p219 = pneg %p56
        $region68: #{step.3} parent=65 // pred_check_branch
          %221 = sbr.rel (%p219) target = $region70
        $region69: #{step.3} parent=65 // pred_region
          _
        $region70: #{step.3} parent=65 // pred_fallthru
          _
        %p222 = pneg %p30
        %p223 = pneg %p27
        %s224 = sand.u32 %s43, 1
        %s225 = sand.u32 %s43, 1
        %s226 = smul.addr %s225, 64
        %s227 = scalar_lea.vmem [#allocation2], %s226
        %p228 = pneg %p56
        %p229 = pneg %p53
        %s230 = smul.u32 2, %s14
        %p231 = scmp.lt.s32.totalorder %s230, 3
        %s232 = scalar_select %p231, %s230, 3
        %s233 = scalar_lea.vmem %s2, %s232
        %p234 = pneg %p82
        %p235 = pneg %p79
        %p236 = pneg %p108
        %p237 = pneg %p105
        %s238 = smul.u32 2, %s14
        %p239 = scmp.lt.s32.totalorder %s238, 3
        %s240 = scalar_select %p239, %s238, 3
        %s241 = scalar_lea.vmem %s3, %s240
        %s242 = smul.u32 2, %s14
        %s243 = smul.u32 2, %s14
        %p244 = scmp.lt.s32.totalorder %s243, 3
        %s245 = scalar_select %p244, %s243, 3
        %s246 = scalar_lea.vmem %s2, %s245
        %s247 = smul.u32 2, %s14
        %s248 = smul.u32 2, %s14
        %p249 = scmp.lt.s32.totalorder %s248, 3
        %s250 = scalar_select %p249, %s248, 3
        %s251 = scalar_lea.vmem %s3, %s250
        %s252 = smul.u32 2, %s14
        %v254 = vld [vmem:[%s0] sm:$0x1]
        %v255 = vpack.c.bf16 %v254, %v254
        %v256 = vld [vmem:[%s218] sm:$0xff]
        %v257 = vld [vmem:[%s218 + $0x8] sm:$0xff]
        %v258 = vld [vmem:[%s218 + $0x10] sm:$0xff]
        %v259 = vld [vmem:[%s218 + $0x18] sm:$0xff]
        %v260 = vld [vmem:[%s218 + $0x20] sm:$0xff]
        %v261 = vld [vmem:[%s218 + $0x28] sm:$0xff]
        %v262 = vld [vmem:[%s218 + $0x30] sm:$0xff]
        %v263 = vld [vmem:[%s218 + $0x38] sm:$0xff]
        %v264 = vld [vmem:[%s246] sm:$0x3]
        %v273 = vunpack.c.l.b16 %v256
        %v274 = vunpack.c.h.b16 %v256
        %v275 = vunpack.c.l.b16 %v257
        %v276 = vunpack.c.h.b16 %v257
        %v277 = vunpack.c.l.b16 %v258
        %v278 = vunpack.c.h.b16 %v258
        %v279 = vunpack.c.l.b16 %v259
        %v280 = vunpack.c.h.b16 %v259
        %v281 = vunpack.c.l.b16 %v260
        %v282 = vunpack.c.h.b16 %v260
        %v283 = vunpack.c.l.b16 %v261
        %v284 = vunpack.c.h.b16 %v261
        %v285 = vunpack.c.l.b16 %v262
        %v286 = vunpack.c.h.b16 %v262
        %v287 = vunpack.c.l.b16 %v263
        %v288 = vunpack.c.h.b16 %v263
        %v289 = vpack.c.b16 %v275, %v273
        %v290 = vpack.c.b16 %v276, %v274
        %v291 = vpack.c.b16 %v279, %v277
        %v292 = vpack.c.b16 %v280, %v278
        %v293 = vpack.c.b16 %v283, %v281
        %v294 = vpack.c.b16 %v284, %v282
        %v295 = vpack.c.b16 %v287, %v285
        %v296 = vpack.c.b16 %v288, %v286
        %v306 = vlaneseq
        %v307 = vshrl.u32 %v306, 7
        %v308 = vsub.s32 0, %v307
        %v309 = vrot.slane %v264, %v308
        %v310 = vlaneseq
        %v311 = vshrl.u32 %v310, 7
        %v312 = vsub.s32 1, %v311
        %v313 = vrot.slane %v264, %v312
        %vm316 = vcmask 523264
        %v318 = vsel %vm316, %v255, 0
        %320 = vmatprep.subr.bf16.mxu0 %v290
        %321 = vmatpush1.bf16.msra.mxu0 %v289
        %322 = vmatprep.subr.bf16.mxu0 %v292
        %323 = vmatpush1.bf16.msra.mxu0 %v291
        %324 = vmatprep.subr.bf16.mxu0 %v294
        %325 = vmatpush1.bf16.msra.mxu0 %v293
        %326 = vmatprep.subr.bf16.mxu0 %v296
        %327 = vmatpush1.bf16.msra.mxu0 %v295
        %328 = vmatprep.subr.bf16.mxu0 0
        %329 = vmatpush1.bf16.msra.mxu0 0
        %330 = vmatprep.subr.bf16.mxu0 0
        %331 = vmatpush1.bf16.msra.mxu0 0
        %332 = vmatprep.subr.bf16.mxu0 0
        %333 = vmatpush1.bf16.msra.mxu0 0
        %334 = vmatprep.subr.bf16.mxu0 0
        %335 = vmatpush1.bf16.msra.mxu0 0
        %336 = vmatprep.subr.bf16.mxu0 0
        %337 = vmatpush1.bf16.msra.mxu0 0
        %338 = vmatprep.subr.bf16.mxu0 0
        %339 = vmatpush1.bf16.msra.mxu0 0
        %340 = vmatprep.subr.bf16.mxu0 0
        %341 = vmatpush1.bf16.msra.mxu0 0
        %342 = vmatprep.subr.bf16.mxu0 0
        %343 = vmatpush1.bf16.msra.mxu0 0
        %344 = vmatprep.subr.bf16.mxu0 0
        %345 = vmatpush1.bf16.msra.mxu0 0
        %346 = vmatprep.subr.bf16.mxu0 0
        %347 = vmatpush1.bf16.msra.mxu0 0
        %348 = vmatprep.subr.bf16.mxu0 0
        %349 = vmatpush1.bf16.msra.mxu0 0
        %350 = vmatprep.subr.bf16.mxu0 0
        %351 = vmatpush1.bf16.msra.mxu0 0
        %352 = vmatprep.mubr.bf16.mxu0 0
        %353 = vmatmul.mubr.bf16.gmra.mrb[0].mxu0 %v318
        %v354 = vpop.f32.mrb[0].mxu0
        %v355 = vadd.f32 %v309, %v354
        %v356 = vpop.f32.mrb[0].mxu0
        %v357 = vadd.f32 %v313, %v356
        %v358 = vpop.f32.mrb[0].mxu0
        %v359 = vpop.f32.mrb[0].mxu0
        %360 = vdwg.mxu0
        %v363 = vcombine.low %v355, %v357
        %v365 = vunpack.c.l.s4 1966171168
        %v366 = vunpack.c.0.s8 %v365
        %v367 = vlaneseq
        %v368 = vshrl.u32 %v367, 7
        %v369 = vsub.s32 %v366, %v368
        %v370 = vrot.slane %v363, %v369
        %v372 = vunpack.c.l.s4 1966171168
        %v373 = vunpack.c.0.s8 %v372
        %v374 = vlaneseq
        %v375 = vshrl.u32 %v374, 7
        %v376 = vsub.s32 %v373, %v375
        %v377 = vrot.slane %v370, %v376
        %v379 = vlaneseq
        %vm380 = vcmp.ge.s32.totalorder %v379, 0
        %vm381 = vcmp.lt.s32.totalorder %v379, 256
        %vm382 = vmand %vm380, %vm381
        %383 = vst.msk [vmem:[%s251] sm:$0x3] %vm382, %v377
        %s384 = smul.u32 2, %s14
        %p385 = scmp.lt.s32.totalorder %s384, 3
        %s386 = scalar_select %p385, %s384, 3
        %s387 = scalar_lea.vmem %s3, %s386
        // Predicated region
        $region71: #{step.3} parent=65 // pred_check
          %p388 = pneg %p105
        $region72: #{step.3} parent=65 // pred_check_branch
          %390 = sbr.rel (%p388) target = $region74
        $region73: #{step.3} parent=65 // pred_region
          %s391 = smul.u32 2, %s14
        $region74: #{step.3} parent=65 // pred_fallthru
          _
      $region66: #{step.3} parent=5 // pred_fallthru
        _
      %p392 = scmp.le.s32.totalorder 2, %s9
      // Predicated region
      $region75: #{step.3} parent=5 // pred_check
        %p393 = pneg %p392
      $region76: #{step.3} parent=5 // pred_check_branch
        %395 = sbr.rel (%p393) target = $region78
      $region77: #{step.3} parent=5 // pred_region
        %s396 = ssub.s32 %s9, 2
        // Predicated region
        $region79: #{step.3} parent=77 // pred_check
          %p397 = pneg %p111
        $region80: #{step.3} parent=77 // pred_check_branch
          %399 = sbr.rel (%p397) target = $region82
        $region81: #{step.3} parent=77 // pred_region
          %s400 = smul.u32 2, %s15
          %p401 = scmp.lt.s32.totalorder %s400, 3
          %s402 = scalar_select %p401, %s400, 3
          %s403 = scalar_lea.vmem %s3, %s402
        $region82: #{step.3} parent=77 // pred_fallthru
          _
      $region78: #{step.3} parent=5 // pred_fallthru
        _
    $region6: #{step.3} parent=1 // loop_footer
      %s13 = sadd.s32 1, %s9
    $region7: #{step.3} parent=1 // loop_footer_branch
      %8 = sbr.rel target = $region3
    $region8: #{step.3} parent=1 // loop_exit
      _

// kernel: step.2
$region0: #{step.2}
  #allocation0 [shape = 'u32[]', space=smem, size = 0x4, offset = 0x4, fixed_abs, tag = 'smem constant byte address 0x4 - core index']
  #allocation1 [shape = 'u32[144,128]{1,0:T(1,128)}', space=vmem, size = 0x12000, scoped, tag = 'internal scratch']
  #allocation2 [shape = 'f32[1,256]{1,0:T(1,128)}', space=vmem, size = 0x400, scoped, tag = 'scratch operand']
  #allocation3 [shape = 'f32[1,256]{1,0:T(1,128)}', space=vmem, size = 0x400, scoped, tag = 'scratch operand']
  #allocation4 [shape = 's32[1]{0}', space=sflag, size = 0x4, scoped, tag = 'scoped memory for step.2']
  #allocation5 [shape = 's32[1]{0:T(128)S(6)}', space=smem, size = 0x200, scoped, tag = 'prefetched SMEM operand 0']
  %s0 = inlined_call_operand.<no memory space> [shape: s32[1], index: 0, kind: input, shape index: {}]
  %s1 = inlined_call_operand.vmem [shape: f32[1,64], index: 1, kind: input, shape index: {}]
  %s2 = inlined_call_operand.vmem [shape: f32[1,64], index: 2, kind: input, shape index: {}]
  %s3 = inlined_call_operand.vmem [shape: f32[1,64], index: 3, kind: input, shape index: {}]
  %s4 = inlined_call_operand.vmem [shape: bf16[16,64], index: 4, kind: input, shape index: {}]
  %s5 = inlined_call_operand.vmem [shape: f32[1,16], index: 5, kind: input, shape index: {}]
  %s6 = inlined_call_operand.vmem [shape: f32[1,16], index: 6, kind: input, shape index: {}]
  %s7 = inlined_call_operand.vmem [shape: bf16[64,16], index: 7, kind: input, shape index: {}]
  %s8 = inlined_call_operand.vmem [shape: bf16[128,16], index: 8, kind: input, shape index: {}]
  %s9 = inlined_call_operand.vmem [shape: f32[1,16], index: 9, kind: input, shape index: {}]
  %s10 = inlined_call_operand.hbm [shape: bf16[256,256], index: 10, kind: input, shape index: {}]
  %s11 = inlined_call_operand.vmem [shape: f32[1,256], index: 11, kind: input, shape index: {}]
  %s12 = inlined_call_operand.vmem [shape: f32[1,64], index: 12, kind: output, shape index: {0}]
  %s13 = inlined_call_operand.hbm [shape: f32[1,64], index: 13, kind: output, shape index: {1}]
  %s14 = inlined_call_operand.vmem [shape: f32[1,16], index: 14, kind: output, shape index: {2}]
  %15 = xla_tuple %s12, %s13, %s14
  %s16 = sld [smem:[#allocation0]]
  $region109: #{step.2} parent=0
    _
  %s18 = ssub.s32 1, %s16
  %s19 = scalar_select 0, %s18, %s16
  %20 = sst [smem:[#allocation5]] %s0
  $region1: #{step.2} parent=0
    #allocation6 [shape = 'u8[131072]{0}', space=vmem, size = 0x20000, scoped, tag = 'input window, operand 10']
    #allocation7 [shape = 's32[2]{0}', space=sflag, size = 0x8, scoped, tag = 'scoped memory for step.2']
    #allocation8 [shape = 's32[2]{0}', space=sflag, size = 0x8, scoped, tag = 'scoped memory for step.2']
    #allocation9 [shape = 'u8[512]{0}', space=vmem, size = 0x400, scoped, tag = 'output window, operand 1, single buffered']
    %21 = vsyncpa [#allocation7], 0
    %s22 = scalar_lea.sflag [#allocation7], 1
    %23 = vsyncpa %s22, 0
    %24 = vsyncpa [#allocation8], 0
    loop: start=0, step=1, limit=4
    $region2: #{step.2} parent=1 // loop_pre_header
      _
    $region3: #{step.2} parent=1 // loop_header
      %s26 = sphi 0, %s30
      %p27 = scmp.ge.s32.totalorder %s26, 4
      %s34 = sphi 0, %s34
      %s36 = sphi 0, %s34
      %s37 = sphi 0, %s36
      %s51 = sphi 0, %s37
      %s55 = sphi 0, %s55
      %s57 = sphi 0, %s55
      %s58 = sphi 0, %s57
      %s72 = sphi 0, %s58
      %s76 = sphi 0, %s76
      %s78 = sphi 0, %s76
      %s79 = sphi 0, %s78
      %s93 = sphi 0, %s79
      %s97 = sphi 0, %s97
      %s99 = sphi 0, %s97
      %s100 = sphi 0, %s99
      %s114 = sphi 0, %s100
      %s118 = sphi 0, %s118
      %s120 = sphi 0, %s118
      %s121 = sphi 0, %s120
      %s135 = sphi 0, %s121
      %s139 = sphi 0, %s139
      %s141 = sphi 0, %s139
      %s142 = sphi 0, %s141
      %s156 = sphi 0, %s142
      %s160 = sphi 0, %s160
      %s162 = sphi 0, %s160
      %s163 = sphi 0, %s162
      %s177 = sphi 0, %s163
      %s181 = sphi 0, %s181
      %s183 = sphi 0, %s181
      %s184 = sphi 0, %s183
      %s198 = sphi 0, %s184
      %s202 = sphi 0, %s202
      %s204 = sphi 0, %s202
      %s205 = sphi 0, %s204
      %s219 = sphi 0, %s205
      %s225 = sphi 0, %s227
      %s228 = sphi 0, %s225
      %s229 = sphi 0, %s228
      %s245 = sphi 0, %s229
      %s251 = sphi 0, %s253
      %s254 = sphi 0, %s251
      %s255 = sphi 0, %s254
      %s271 = sphi 0, %s255
      %s275 = sphi 0, %s275
      %s277 = sphi 0, %s275
      %s278 = sphi 0, %s277
      %s292 = sphi 0, %s278
      %s296 = sphi 0, %s296
      %s298 = sphi 0, %s296
      %s299 = sphi 0, %s298
      %s313 = sphi 0, %s299
      %s317 = sphi 0, %s317
      %s319 = sphi 0, %s317
      %s320 = sphi 0, %s319
      %s334 = sphi 0, %s320
    $region4: #{step.2} parent=1 // loop_header_branch
      %29 = sbr.rel (%p27) target = $region8
    $region5: #{step.2} parent=1 // loop_body
      %s31 = ssub.s32 %s26, 1
      %s32 = ssub.s32 %s26, 2
      %s33 = sadd.s32 %s26, 1
      %s35 = sadd.s32 %s34, 1
      %p38 = scmp.eq.s32.totalorder %s26, 1
      %p39 = scmp.ne.s32.totalorder %s34, %s36
      %p40 = scmp.eq.s32.totalorder %s26, 0
      %p41 = por %p39, %p40
      %p42 = scmp.ne.s32.totalorder %s34, %s36
      %p43 = scmp.eq.s32.totalorder %s31, 1
      %p44 = por %p42, %p43
      %p45 = scmp.ne.s32.totalorder %s36, %s37
      %p46 = scmp.eq.s32.totalorder %s31, 0
      %p47 = por %p45, %p46
      %p48 = scmp.ne.s32.totalorder %s36, %s37
      %p49 = scmp.eq.s32.totalorder %s32, 1
      %p50 = por %p48, %p49
      %p52 = scmp.ne.s32.totalorder %s37, %s51
      %p53 = scmp.eq.s32.totalorder %s32, 0
      %p54 = por %p52, %p53
      %s56 = sadd.s32 %s55, 1
      %p59 = scmp.eq.s32.totalorder %s26, 1
      %p60 = scmp.ne.s32.totalorder %s55, %s57
      %p61 = scmp.eq.s32.totalorder %s26, 0
      %p62 = por %p60, %p61
      %p63 = scmp.ne.s32.totalorder %s55, %s57
      %p64 = scmp.eq.s32.totalorder %s31, 1
      %p65 = por %p63, %p64
      %p66 = scmp.ne.s32.totalorder %s57, %s58
      %p67 = scmp.eq.s32.totalorder %s31, 0
      %p68 = por %p66, %p67
      %p69 = scmp.ne.s32.totalorder %s57, %s58
      %p70 = scmp.eq.s32.totalorder %s32, 1
      %p71 = por %p69, %p70
      %p73 = scmp.ne.s32.totalorder %s58, %s72
      %p74 = scmp.eq.s32.totalorder %s32, 0
      %p75 = por %p73, %p74
      %s77 = sadd.s32 %s76, 1
      %p80 = scmp.eq.s32.totalorder %s26, 1
      %p81 = scmp.ne.s32.totalorder %s76, %s78
      %p82 = scmp.eq.s32.totalorder %s26, 0
      %p83 = por %p81, %p82
      %p84 = scmp.ne.s32.totalorder %s76, %s78
      %p85 = scmp.eq.s32.totalorder %s31, 1
      %p86 = por %p84, %p85
      %p87 = scmp.ne.s32.totalorder %s78, %s79
      %p88 = scmp.eq.s32.totalorder %s31, 0
      %p89 = por %p87, %p88
      %p90 = scmp.ne.s32.totalorder %s78, %s79
      %p91 = scmp.eq.s32.totalorder %s32, 1
      %p92 = por %p90, %p91
      %p94 = scmp.ne.s32.totalorder %s79, %s93
      %p95 = scmp.eq.s32.totalorder %s32, 0
      %p96 = por %p94, %p95
      %s98 = sadd.s32 %s97, 1
      %p101 = scmp.eq.s32.totalorder %s26, 1
      %p102 = scmp.ne.s32.totalorder %s97, %s99
      %p103 = scmp.eq.s32.totalorder %s26, 0
      %p104 = por %p102, %p103
      %p105 = scmp.ne.s32.totalorder %s97, %s99
      %p106 = scmp.eq.s32.totalorder %s31, 1
      %p107 = por %p105, %p106
      %p108 = scmp.ne.s32.totalorder %s99, %s100
      %p109 = scmp.eq.s32.totalorder %s31, 0
      %p110 = por %p108, %p109
      %p111 = scmp.ne.s32.totalorder %s99, %s100
      %p112 = scmp.eq.s32.totalorder %s32, 1
      %p113 = por %p111, %p112
      %p115 = scmp.ne.s32.totalorder %s100, %s114
      %p116 = scmp.eq.s32.totalorder %s32, 0
      %p117 = por %p115, %p116
      %s119 = sadd.s32 %s118, 1
      %p122 = scmp.eq.s32.totalorder %s26, 1
      %p123 = scmp.ne.s32.totalorder %s118, %s120
      %p124 = scmp.eq.s32.totalorder %s26, 0
      %p125 = por %p123, %p124
      %p126 = scmp.ne.s32.totalorder %s118, %s120
      %p127 = scmp.eq.s32.totalorder %s31, 1
      %p128 = por %p126, %p127
      %p129 = scmp.ne.s32.totalorder %s120, %s121
      %p130 = scmp.eq.s32.totalorder %s31, 0
      %p131 = por %p129, %p130
      %p132 = scmp.ne.s32.totalorder %s120, %s121
      %p133 = scmp.eq.s32.totalorder %s32, 1
      %p134 = por %p132, %p133
      %p136 = scmp.ne.s32.totalorder %s121, %s135
      %p137 = scmp.eq.s32.totalorder %s32, 0
      %p138 = por %p136, %p137
      %s140 = sadd.s32 %s139, 1
      %p143 = scmp.eq.s32.totalorder %s26, 1
      %p144 = scmp.ne.s32.totalorder %s139, %s141
      %p145 = scmp.eq.s32.totalorder %s26, 0
      %p146 = por %p144, %p145
      %p147 = scmp.ne.s32.totalorder %s139, %s141
      %p148 = scmp.eq.s32.totalorder %s31, 1
      %p149 = por %p147, %p148
      %p150 = scmp.ne.s32.totalorder %s141, %s142
      %p151 = scmp.eq.s32.totalorder %s31, 0
      %p152 = por %p150, %p151
      %p153 = scmp.ne.s32.totalorder %s141, %s142
      %p154 = scmp.eq.s32.totalorder %s32, 1
      %p155 = por %p153, %p154
      %p157 = scmp.ne.s32.totalorder %s142, %s156
      %p158 = scmp.eq.s32.totalorder %s32, 0
      %p159 = por %p157, %p158
      %s161 = sadd.s32 %s160, 1
      %p164 = scmp.eq.s32.totalorder %s26, 1
      %p165 = scmp.ne.s32.totalorder %s160, %s162
      %p166 = scmp.eq.s32.totalorder %s26, 0
      %p167 = por %p165, %p166
      %p168 = scmp.ne.s32.totalorder %s160, %s162
      %p169 = scmp.eq.s32.totalorder %s31, 1
      %p170 = por %p168, %p169
      %p171 = scmp.ne.s32.totalorder %s162, %s163
      %p172 = scmp.eq.s32.totalorder %s31, 0
      %p173 = por %p171, %p172
      %p174 = scmp.ne.s32.totalorder %s162, %s163
      %p175 = scmp.eq.s32.totalorder %s32, 1
      %p176 = por %p174, %p175
      %p178 = scmp.ne.s32.totalorder %s163, %s177
      %p179 = scmp.eq.s32.totalorder %s32, 0
      %p180 = por %p178, %p179
      %s182 = sadd.s32 %s181, 1
      %p185 = scmp.eq.s32.totalorder %s26, 1
      %p186 = scmp.ne.s32.totalorder %s181, %s183
      %p187 = scmp.eq.s32.totalorder %s26, 0
      %p188 = por %p186, %p187
      %p189 = scmp.ne.s32.totalorder %s181, %s183
      %p190 = scmp.eq.s32.totalorder %s31, 1
      %p191 = por %p189, %p190
      %p192 = scmp.ne.s32.totalorder %s183, %s184
      %p193 = scmp.eq.s32.totalorder %s31, 0
      %p194 = por %p192, %p193
      %p195 = scmp.ne.s32.totalorder %s183, %s184
      %p196 = scmp.eq.s32.totalorder %s32, 1
      %p197 = por %p195, %p196
      %p199 = scmp.ne.s32.totalorder %s184, %s198
      %p200 = scmp.eq.s32.totalorder %s32, 0
      %p201 = por %p199, %p200
      %s203 = sadd.s32 %s202, 1
      %p206 = scmp.eq.s32.totalorder %s26, 1
      %p207 = scmp.ne.s32.totalorder %s202, %s204
      %p208 = scmp.eq.s32.totalorder %s26, 0
      %p209 = por %p207, %p208
      %p210 = scmp.ne.s32.totalorder %s202, %s204
      %p211 = scmp.eq.s32.totalorder %s31, 1
      %p212 = por %p210, %p211
      %p213 = scmp.ne.s32.totalorder %s204, %s205
      %p214 = scmp.eq.s32.totalorder %s31, 0
      %p215 = por %p213, %p214
      %p216 = scmp.ne.s32.totalorder %s204, %s205
      %p217 = scmp.eq.s32.totalorder %s32, 1
      %p218 = por %p216, %p217
      %p220 = scmp.ne.s32.totalorder %s205, %s219
      %p221 = scmp.eq.s32.totalorder %s32, 0
      %p222 = por %p220, %p221
      %s223 = ssub.s32 %s26, %s33
      %p224 = scmp.eq.s32.totalorder %s223, 0
      %s226 = sadd.s32 %s225, 1
      %s227 = scalar_select %p224, %s225, %s226
      %p230 = pneg %p224
      %p231 = scmp.eq.s32.totalorder %s26, 1
      %p232 = por %p230, %p231
      %p233 = scmp.ne.s32.totalorder %s225, %s228
      %p234 = scmp.eq.s32.totalorder %s26, 0
      %p235 = por %p233, %p234
      %p236 = scmp.ne.s32.totalorder %s225, %s228
      %p237 = scmp.eq.s32.totalorder %s31, 1
      %p238 = por %p236, %p237
      %p239 = scmp.ne.s32.totalorder %s228, %s229
      %p240 = scmp.eq.s32.totalorder %s31, 0
      %p241 = por %p239, %p240
      %p242 = scmp.ne.s32.totalorder %s228, %s229
      %p243 = scmp.eq.s32.totalorder %s32, 1
      %p244 = por %p242, %p243
      %p246 = scmp.ne.s32.totalorder %s229, %s245
      %p247 = scmp.eq.s32.totalorder %s32, 0
      %p248 = por %p246, %p247
      %s249 = ssub.s32 %s26, %s33
      %p250 = scmp.eq.s32.totalorder %s249, 0
      %s252 = sadd.s32 %s251, 1
      %s253 = scalar_select %p250, %s251, %s252
      %p256 = pneg %p250
      %p257 = scmp.eq.s32.totalorder %s26, 1
      %p258 = por %p256, %p257
      %p259 = scmp.ne.s32.totalorder %s251, %s254
      %p260 = scmp.eq.s32.totalorder %s26, 0
      %p261 = por %p259, %p260
      %p262 = scmp.ne.s32.totalorder %s251, %s254
      %p263 = scmp.eq.s32.totalorder %s31, 1
      %p264 = por %p262, %p263
      %p265 = scmp.ne.s32.totalorder %s254, %s255
      %p266 = scmp.eq.s32.totalorder %s31, 0
      %p267 = por %p265, %p266
      %p268 = scmp.ne.s32.totalorder %s254, %s255
      %p269 = scmp.eq.s32.totalorder %s32, 1
      %p270 = por %p268, %p269
      %p272 = scmp.ne.s32.totalorder %s255, %s271
      %p273 = scmp.eq.s32.totalorder %s32, 0
      %p274 = por %p272, %p273
      %s276 = sadd.s32 %s275, 1
      %p279 = scmp.eq.s32.totalorder %s26, 1
      %p280 = scmp.ne.s32.totalorder %s275, %s277
      %p281 = scmp.eq.s32.totalorder %s26, 0
      %p282 = por %p280, %p281
      %p283 = scmp.ne.s32.totalorder %s275, %s277
      %p284 = scmp.eq.s32.totalorder %s31, 1
      %p285 = por %p283, %p284
      %p286 = scmp.ne.s32.totalorder %s277, %s278
      %p287 = scmp.eq.s32.totalorder %s31, 0
      %p288 = por %p286, %p287
      %p289 = scmp.ne.s32.totalorder %s277, %s278
      %p290 = scmp.eq.s32.totalorder %s32, 1
      %p291 = por %p289, %p290
      %p293 = scmp.ne.s32.totalorder %s278, %s292
      %p294 = scmp.eq.s32.totalorder %s32, 0
      %p295 = por %p293, %p294
      %s297 = sadd.s32 %s296, 1
      %p300 = scmp.eq.s32.totalorder %s26, 1
      %p301 = scmp.ne.s32.totalorder %s296, %s298
      %p302 = scmp.eq.s32.totalorder %s26, 0
      %p303 = por %p301, %p302
      %p304 = scmp.ne.s32.totalorder %s296, %s298
      %p305 = scmp.eq.s32.totalorder %s31, 1
      %p306 = por %p304, %p305
      %p307 = scmp.ne.s32.totalorder %s298, %s299
      %p308 = scmp.eq.s32.totalorder %s31, 0
      %p309 = por %p307, %p308
      %p310 = scmp.ne.s32.totalorder %s298, %s299
      %p311 = scmp.eq.s32.totalorder %s32, 1
      %p312 = por %p310, %p311
      %p314 = scmp.ne.s32.totalorder %s299, %s313
      %p315 = scmp.eq.s32.totalorder %s32, 0
      %p316 = por %p314, %p315
      %s318 = sadd.s32 %s317, 1
      %p321 = scmp.eq.s32.totalorder %s26, 1
      %p322 = scmp.ne.s32.totalorder %s317, %s319
      %p323 = scmp.eq.s32.totalorder %s26, 0
      %p324 = por %p322, %p323
      %p325 = scmp.ne.s32.totalorder %s317, %s319
      %p326 = scmp.eq.s32.totalorder %s31, 1
      %p327 = por %p325, %p326
      %p328 = scmp.ne.s32.totalorder %s319, %s320
      %p329 = scmp.eq.s32.totalorder %s31, 0
      %p330 = por %p328, %p329
      %p331 = scmp.ne.s32.totalorder %s319, %s320
      %p332 = scmp.eq.s32.totalorder %s32, 1
      %p333 = por %p331, %p332
      %p335 = scmp.ne.s32.totalorder %s320, %s334
      %p336 = scmp.eq.s32.totalorder %s32, 0
      %p337 = por %p335, %p336
      %p338 = scmp.le.s32.totalorder 1, %s26
      %p339 = scmp.lt.s32.totalorder %s26, 3
      %p340 = pnand %p338, %p339
      %p341 = pneg %p340
      // Predicated region
      $region9: #{step.2} parent=5 // pred_check
        _
      $region10: #{step.2} parent=5 // pred_check_branch
        %343 = sbr.rel (%p340) target = $region12
      $region11: #{step.2} parent=5 // pred_region
        %s344 = ssub.s32 %s26, 1
        // Predicated region
        $region13: #{step.2} parent=11 // pred_check
          %p345 = pneg %p47
        $region14: #{step.2} parent=11 // pred_check_branch
          %347 = sbr.rel (%p345) target = $region16
        $region15: #{step.2} parent=11 // pred_region
          _
        $region16: #{step.2} parent=11 // pred_fallthru
          _
        // Predicated region
        $region17: #{step.2} parent=11 // pred_check
          %p348 = pneg %p68
        $region18: #{step.2} parent=11 // pred_check_branch
          %350 = sbr.rel (%p348) target = $region20
        $region19: #{step.2} parent=11 // pred_region
          _
        $region20: #{step.2} parent=11 // pred_fallthru
          _
        // Predicated region
        $region21: #{step.2} parent=11 // pred_check
          %p351 = pneg %p89
        $region22: #{step.2} parent=11 // pred_check_branch
          %353 = sbr.rel (%p351) target = $region24
        $region23: #{step.2} parent=11 // pred_region
          _
        $region24: #{step.2} parent=11 // pred_fallthru
          _
        // Predicated region
        $region25: #{step.2} parent=11 // pred_check
          %p354 = pneg %p110
        $region26: #{step.2} parent=11 // pred_check_branch
          %356 = sbr.rel (%p354) target = $region28
        $region27: #{step.2} parent=11 // pred_region
          _
        $region28: #{step.2} parent=11 // pred_fallthru
          _
        // Predicated region
        $region29: #{step.2} parent=11 // pred_check
          %p357 = pneg %p131
        $region30: #{step.2} parent=11 // pred_check_branch
          %359 = sbr.rel (%p357) target = $region32
        $region31: #{step.2} parent=11 // pred_region
          _
        $region32: #{step.2} parent=11 // pred_fallthru
          _
        // Predicated region
        $region33: #{step.2} parent=11 // pred_check
          %p360 = pneg %p152
        $region34: #{step.2} parent=11 // pred_check_branch
          %362 = sbr.rel (%p360) target = $region36
        $region35: #{step.2} parent=11 // pred_region
          _
        $region36: #{step.2} parent=11 // pred_fallthru
          _
        // Predicated region
        $region37: #{step.2} parent=11 // pred_check
          %p363 = pneg %p173
        $region38: #{step.2} parent=11 // pred_check_branch
          %365 = sbr.rel (%p363) target = $region40
        $region39: #{step.2} parent=11 // pred_region
          _
        $region40: #{step.2} parent=11 // pred_fallthru
          _
        // Predicated region
        $region41: #{step.2} parent=11 // pred_check
          %p366 = pneg %p194
        $region42: #{step.2} parent=11 // pred_check_branch
          %368 = sbr.rel (%p366) target = $region44
        $region43: #{step.2} parent=11 // pred_region
          _
        $region44: #{step.2} parent=11 // pred_fallthru
          _
        // Predicated region
        $region45: #{step.2} parent=11 // pred_check
          %p369 = pneg %p215
        $region46: #{step.2} parent=11 // pred_check_branch
          %371 = sbr.rel (%p369) target = $region48
        $region47: #{step.2} parent=11 // pred_region
          _
        $region48: #{step.2} parent=11 // pred_fallthru
          _
      $region12: #{step.2} parent=5 // pred_fallthru
        _
      %p372 = scmp.lt.s32.totalorder %s26, 2
      // Predicated region
      $region49: #{step.2} parent=5 // pred_check
        %p373 = pneg %p372
      $region50: #{step.2} parent=5 // pred_check_branch
        %375 = sbr.rel (%p373) target = $region52
      $region51: #{step.2} parent=5 // pred_region
        // Predicated region
        $region53: #{step.2} parent=51 // pred_check
          %p376 = pneg %p235
        $region54: #{step.2} parent=51 // pred_check_branch
          %378 = sbr.rel (%p376) target = $region56
        $region55: #{step.2} parent=51 // pred_region
          %s379 = sand.u32 %s225, 1
          %s380 = scalar_lea.sflag [#allocation7], %s379
          %s381 = sand.u32 %s225, 1
          %s382 = smul.addr %s381, 128
          %s383 = scalar_lea.vmem [#allocation6], %s382
          %s385 = ssub.s32 2048, 2048
          %386 = vsyncadd %s380, %s385
          %s387 = smul.addr %s26, 64
          %s388 = scalar_lea.hbm %s10, %s387
          %s389 = sshll.u32 %s383, 4
          %s390 = int_to_ptr.vmem [resolvable:$true] %s389
          %395 = dma.hbm_to_vmem [thread:$0]  %s388, 2048, %s390, %s380, 128, 64, 4
        $region56: #{step.2} parent=51 // pred_fallthru
          _
        // Predicated region
        $region57: #{step.2} parent=51 // pred_check
          %p396 = pneg %p261
        $region58: #{step.2} parent=51 // pred_check_branch
          %398 = sbr.rel (%p396) target = $region60
        $region59: #{step.2} parent=51 // pred_region
          %p399 = scmp.lt.s32.totalorder %s26, 1
          %s400 = scalar_select %p399, %s26, 1
          %s401 = scalar_lea.vmem %s11, %s400
        $region60: #{step.2} parent=51 // pred_fallthru
          _
      $region52: #{step.2} parent=5 // pred_fallthru
        _
      %p402 = scmp.le.s32.totalorder 1, %s26
      %p403 = scmp.lt.s32.totalorder %s26, 3
      %p404 = pnand %p402, %p403
      %p405 = pneg %p404
      // Predicated region
      $region61: #{step.2} parent=5 // pred_check
        _
      $region62: #{step.2} parent=5 // pred_check_branch
        %407 = sbr.rel (%p404) target = $region64
      $region63: #{step.2} parent=5 // pred_region
        %s408 = ssub.s32 %s26, 1
        %s409 = sand.u32 %s228, 1
        %s410 = scalar_lea.sflag [#allocation7], %s409
        %s411 = sand.u32 %s228, 1
        %s412 = smul.addr %s411, 128
        %s413 = scalar_lea.vmem [#allocation6], %s412
        // Predicated region
        $region65: #{step.2} parent=63 // pred_check
          %p414 = pneg %p241
        $region66: #{step.2} parent=63 // pred_check_branch
          %416 = sbr.rel (%p414) target = $region68
        $region67: #{step.2} parent=63 // pred_region
          %417 = dma.done %s410, 2048
        $region68: #{step.2} parent=63 // pred_fallthru
          _
        %p418 = pneg %p47
        %p419 = pneg %p44
        %p420 = pneg %p68
        %p421 = pneg %p65
        %p422 = pneg %p89
        %p423 = pneg %p86
        %p424 = pneg %p110
        %p425 = pneg %p107
        %p426 = pneg %p131
        %p427 = pneg %p128
        %p428 = pneg %p152
        %p429 = pneg %p149
        %p430 = pneg %p173
        %p431 = pneg %p170
        %p432 = pneg %p194
        %p433 = pneg %p191
        %p434 = pneg %p215
        %p435 = pneg %p212
        %s436 = sand.u32 %s228, 1
        %s437 = scalar_lea.sflag [#allocation7], %s436
        %s438 = sand.u32 %s228, 1
        %s439 = smul.addr %s438, 128
        %s440 = scalar_lea.vmem [#allocation6], %s439
        %p441 = pneg %p241
        %p442 = pneg %p238
        %p443 = scmp.lt.s32.totalorder %s31, 1
        %s444 = scalar_select %p443, %s31, 1
        %s445 = scalar_lea.vmem %s11, %s444
        %p446 = pneg %p267
        %p447 = pneg %p264
        %p448 = pneg %p288
        %p449 = pneg %p285
        %p450 = pneg %p309
        %p451 = pneg %p306
        %p452 = pneg %p330
        %p453 = pneg %p327
        %p454 = scmp.lt.s32.totalorder %s31, 1
        %s455 = scalar_select %p454, %s31, 1
        %s456 = scalar_lea.vmem %s11, %s455
        %p458 = scmp.eq.s32.totalorder %s31, 0
        // Predicated region
        $region69: #{step.2} parent=63 // pred_check
          %p459 = pneg %p458
        $region70: #{step.2} parent=63 // pred_check_branch
          %461 = sbr.rel (%p459) target = $region72
        $region71: #{step.2} parent=63 // pred_region
          %v462 = vld [vmem:[%s1] sm:$0x1]
          %v463 = vld [vmem:[%s2] sm:$0x1]
          %v465 = vlaneseq
          %v466 = vshrl.u32 %v465, 7
          %v467 = vsub.s32 0, %v466
          %v468 = vrot.slane %v463, %v467
          %469 = vrot.lane.b32.xlu0 %v468, 64
          %v470 = vpop.permute.xlu0 %469
          %vm472 = vcmask 523264
          %v473 = vsel %vm472, %v462, 0.0
          %v474 = vsel %vm472, 0.0, %v470
          %v477 = vcombine.low %v473, %v474
          %v479 = vunpack.c.l.s4 1966171168
          %v480 = vunpack.c.0.s8 %v479
          %v481 = vlaneseq
          %v482 = vshrl.u32 %v481, 7
          %v483 = vsub.s32 %v480, %v482
          %v484 = vrot.slane %v477, %v483
          %v486 = vunpack.c.l.s4 1966171168
          %v487 = vunpack.c.0.s8 %v486
          %v488 = vlaneseq
          %v489 = vshrl.u32 %v488, 7
          %v490 = vsub.s32 %v487, %v489
          %v491 = vrot.slane %v484, %v490
          %v493 = vlaneseq
          %vm494 = vcmp.ge.s32.totalorder %v493, 0
          %vm495 = vcmp.lt.s32.totalorder %v493, 256
          %vm496 = vmand %vm494, %vm495
          %497 = vst.msk [vmem:[#allocation2] sm:$0x3] %vm496, %v491
        $region72: #{step.2} parent=63 // pred_fallthru
          _
        %s498 = sld [smem:[#allocation5]]
        %p499 = scmp.ne.s32.totalorder %s498, 0
        %p500 = pnand %p458, %p499
        %p501 = pneg %p500
        // Predicated region
        $region73: #{step.2} parent=63 // pred_check
          _
        $region74: #{step.2} parent=63 // pred_check_branch
          %503 = sbr.rel (%p500) target = $region76
        $region75: #{step.2} parent=63 // pred_region
          %v504 = vld [vmem:[%s1] sm:$0x1]
          %v505 = vld [vmem:[%s2] sm:$0x1]
          %v507 = vlaneseq
          %v508 = vshrl.u32 %v507, 7
          %v509 = vsub.s32 0, %v508
          %v510 = vrot.slane %v505, %v509
          %511 = vrot.lane.b32.xlu0 %v510, 64
          %v512 = vpop.permute.xlu0 %511
          %vm514 = vcmask 523264
          %v515 = vsel %vm514, %v504, %v512
          %v516 = vpack.c.bf16 %v515, %v515
          %v517 = vld [vmem:[%s8] sm:$0xf]
          %v518 = vld [vmem:[%s8 + $0x4] sm:$0xf]
          %v519 = vld [vmem:[%s8 + $0x8] sm:$0xf]
          %v520 = vld [vmem:[%s8 + $0xc] sm:$0xf]
          %v521 = vld [vmem:[%s8 + $0x10] sm:$0xf]
          %v522 = vld [vmem:[%s8 + $0x14] sm:$0xf]
          %v523 = vld [vmem:[%s8 + $0x18] sm:$0xf]
          %v524 = vld [vmem:[%s8 + $0x1c] sm:$0xf]
          %v525 = vld [vmem:[%s8 + $0x20] sm:$0xf]
          %v526 = vld [vmem:[%s8 + $0x24] sm:$0xf]
          %v527 = vld [vmem:[%s8 + $0x28] sm:$0xf]
          %v528 = vld [vmem:[%s8 + $0x2c] sm:$0xf]
          %v529 = vld [vmem:[%s8 + $0x30] sm:$0xf]
          %v530 = vld [vmem:[%s8 + $0x34] sm:$0xf]
          %v531 = vld [vmem:[%s8 + $0x38] sm:$0xf]
          %v532 = vld [vmem:[%s8 + $0x3c] sm:$0xf]
          %v533 = vld [vmem:[%s9] sm:$0x1]
          %v550 = vunpack.c.l.b16 %v517
          %v551 = vunpack.c.l.b16 %v518
          %v552 = vunpack.c.l.b16 %v519
          %v553 = vunpack.c.l.b16 %v520
          %v554 = vunpack.c.l.b16 %v521
          %v555 = vunpack.c.l.b16 %v522
          %v556 = vunpack.c.l.b16 %v523
          %v557 = vunpack.c.l.b16 %v524
          %v558 = vunpack.c.l.b16 %v525
          %v559 = vunpack.c.l.b16 %v526
          %v560 = vunpack.c.l.b16 %v527
          %v561 = vunpack.c.l.b16 %v528
          %v562 = vunpack.c.l.b16 %v529
          %v563 = vunpack.c.l.b16 %v530
          %v564 = vunpack.c.l.b16 %v531
          %v565 = vunpack.c.l.b16 %v532
          %v566 = vpack.c.b16 %v551, %v550
          %v567 = vpack.c.b16 %v553, %v552
          %v568 = vpack.c.b16 %v555, %v554
          %v569 = vpack.c.b16 %v557, %v556
          %v570 = vpack.c.b16 %v559, %v558
          %v571 = vpack.c.b16 %v561, %v560
          %v572 = vpack.c.b16 %v563, %v562
          %v573 = vpack.c.b16 %v565, %v564
          %582 = vmatprep.subr.bf16.mxu0 0
          %583 = vmatpush1.bf16.msra.mxu0 %v566
          %584 = vmatprep.subr.bf16.mxu0 0
          %585 = vmatpush1.bf16.msra.mxu0 %v567
          %586 = vmatprep.subr.bf16.mxu0 0
          %587 = vmatpush1.bf16.msra.mxu0 %v568
          %588 = vmatprep.subr.bf16.mxu0 0
          %589 = vmatpush1.bf16.msra.mxu0 %v569
          %590 = vmatprep.subr.bf16.mxu0 0
          %591 = vmatpush1.bf16.msra.mxu0 %v570
          %592 = vmatprep.subr.bf16.mxu0 0
          %593 = vmatpush1.bf16.msra.mxu0 %v571
          %594 = vmatprep.subr.bf16.mxu0 0
          %595 = vmatpush1.bf16.msra.mxu0 %v572
          %596 = vmatprep.subr.bf16.mxu0 0
          %597 = vmatpush1.bf16.msra.mxu0 %v573
          %598 = vmatprep.subr.bf16.mxu0 0
          %599 = vmatpush1.bf16.msra.mxu0 0
          %600 = vmatprep.subr.bf16.mxu0 0
          %601 = vmatpush1.bf16.msra.mxu0 0
          %602 = vmatprep.subr.bf16.mxu0 0
          %603 = vmatpush1.bf16.msra.mxu0 0
          %604 = vmatprep.subr.bf16.mxu0 0
          %605 = vmatpush1.bf16.msra.mxu0 0
          %606 = vmatprep.subr.bf16.mxu0 0
          %607 = vmatpush1.bf16.msra.mxu0 0
          %608 = vmatprep.subr.bf16.mxu0 0
          %609 = vmatpush1.bf16.msra.mxu0 0
          %610 = vmatprep.subr.bf16.mxu0 0
          %611 = vmatpush1.bf16.msra.mxu0 0
          %612 = vmatprep.subr.bf16.mxu0 0
          %613 = vmatpush1.bf16.msra.mxu0 0
          %614 = vmatprep.mubr.bf16.mxu0 0
          %615 = vmatmul.mubr.bf16.gmra.mrb[0].mxu0 %v516
          %v616 = vpop.f32.mrb[0].mxu0
          %v617 = vadd.f32 %v533, %v616
          %v618 = vpop.f32.mrb[0].mxu0
          %v619 = vpop.f32.mrb[0].mxu0
          %v620 = vpop.f32.mrb[0].mxu0
          %621 = vdwg.mxu0
          %vm622 = vcmask 122880
          %v623 = vsel %vm622, %v617, -inf
          %624 = vmax.xlane.f32.xlu0 %v623
          %v625 = vpop.xlane.xlu0 %624
          %v626 = vsub.f32 %v617, %v625
          %v627 = vmul.f32 %v626, 1.442695
          %v628 = vpow.pop %v627
          %v629 = vsel %vm622, %v628, 0.0
          %630 = vadd.xlane.f32.xlu0 %v629
          %v631 = vpop.xlane.xlu0 %630
          %v632 = vrcp.pop %v631
          %v633 = vmul.f32 %v628, %v632
          %v634 = vpack.c.bf16 %v633, %v633
          %v635 = vld [vmem:[%s4] sm:$0xf]
          %v636 = vld [vmem:[%s4 + $0x4] sm:$0xf]
          %v639 = vunpack.c.l.b16 %v635
          %v640 = vunpack.c.l.b16 %v636
          %v641 = vpack.c.b16 %v640, %v639
          %vm643 = vcmask 130048
          %v645 = vsel %vm643, %v634, 0
          %647 = vmatprep.subr.bf16.mxu0 0
          %648 = vmatpush1.bf16.msra.mxu0 %v641
          %649 = vmatprep.subr.bf16.mxu0 0
          %650 = vmatpush1.bf16.msra.mxu0 0
          %651 = vmatprep.subr.bf16.mxu0 0
          %652 = vmatpush1.bf16.msra.mxu0 0
          %653 = vmatprep.subr.bf16.mxu0 0
          %654 = vmatpush1.bf16.msra.mxu0 0
          %655 = vmatprep.subr.bf16.mxu0 0
          %656 = vmatpush1.bf16.msra.mxu0 0
          %657 = vmatprep.subr.bf16.mxu0 0
          %658 = vmatpush1.bf16.msra.mxu0 0
          %659 = vmatprep.subr.bf16.mxu0 0
          %660 = vmatpush1.bf16.msra.mxu0 0
          %661 = vmatprep.subr.bf16.mxu0 0
          %662 = vmatpush1.bf16.msra.mxu0 0
          %663 = vmatprep.subr.bf16.mxu0 0
          %664 = vmatpush1.bf16.msra.mxu0 0
          %665 = vmatprep.subr.bf16.mxu0 0
          %666 = vmatpush1.bf16.msra.mxu0 0
          %667 = vmatprep.subr.bf16.mxu0 0
          %668 = vmatpush1.bf16.msra.mxu0 0
          %669 = vmatprep.subr.bf16.mxu0 0
          %670 = vmatpush1.bf16.msra.mxu0 0
          %671 = vmatprep.subr.bf16.mxu0 0
          %672 = vmatpush1.bf16.msra.mxu0 0
          %673 = vmatprep.subr.bf16.mxu0 0
          %674 = vmatpush1.bf16.msra.mxu0 0
          %675 = vmatprep.subr.bf16.mxu0 0
          %676 = vmatpush1.bf16.msra.mxu0 0
          %677 = vmatprep.subr.bf16.mxu0 0
          %678 = vmatpush1.bf16.msra.mxu0 0
          %679 = vmatprep.mubr.bf16.mxu0 0
          %680 = vmatmul.mubr.bf16.gmra.mrb[0].mxu0 %v645
          %v681 = vpop.f32.mrb[0].mxu0
          %v682 = vadd.f32 0.0, %v681
          %v683 = vpop.f32.mrb[0].mxu0
          %v684 = vpop.f32.mrb[0].mxu0
          %v685 = vpop.f32.mrb[0].mxu0
          %686 = vdwg.mxu0
          %v687 = vld [vmem:[%s5] sm:$0x1]
          %v688 = vld [vmem:[%s6] sm:$0x1]
          %v689 = vmul.f32 %v687, %v688
          %v690 = vsel %vm622, %v689, 0.0
          %691 = vadd.xlane.f32.xlu0 %v690
          %v692 = vpop.xlane.xlu0 %691
          %vm693 = vcmp.gt.f32.partialorder %v692, 0.0
          %v694 = vrcp.pop %v692
          %v695 = vsel %vm693, %v694, 1.0
          %v696 = vmul.f32 %v689, %v695
          %v697 = vpack.c.bf16 %v696, %v696
          %v699 = vsel %vm643, %v697, 0
          %701 = vmatprep.subr.bf16.mxu0 0
          %702 = vmatpush1.bf16.msra.mxu0 %v641
          %703 = vmatprep.subr.bf16.mxu0 0
          %704 = vmatpush1.bf16.msra.mxu0 0
          %705 = vmatprep.subr.bf16.mxu0 0
          %706 = vmatpush1.bf16.msra.mxu0 0
          %707 = vmatprep.subr.bf16.mxu0 0
          %708 = vmatpush1.bf16.msra.mxu0 0
          %709 = vmatprep.subr.bf16.mxu0 0
          %710 = vmatpush1.bf16.msra.mxu0 0
          %711 = vmatprep.subr.bf16.mxu0 0
          %712 = vmatpush1.bf16.msra.mxu0 0
          %713 = vmatprep.subr.bf16.mxu0 0
          %714 = vmatpush1.bf16.msra.mxu0 0
          %715 = vmatprep.subr.bf16.mxu0 0
          %716 = vmatpush1.bf16.msra.mxu0 0
          %717 = vmatprep.subr.bf16.mxu0 0
          %718 = vmatpush1.bf16.msra.mxu0 0
          %719 = vmatprep.subr.bf16.mxu0 0
          %720 = vmatpush1.bf16.msra.mxu0 0
          %721 = vmatprep.subr.bf16.mxu0 0
          %722 = vmatpush1.bf16.msra.mxu0 0
          %723 = vmatprep.subr.bf16.mxu0 0
          %724 = vmatpush1.bf16.msra.mxu0 0
          %725 = vmatprep.subr.bf16.mxu0 0
          %726 = vmatpush1.bf16.msra.mxu0 0
          %727 = vmatprep.subr.bf16.mxu0 0
          %728 = vmatpush1.bf16.msra.mxu0 0
          %729 = vmatprep.subr.bf16.mxu0 0
          %730 = vmatpush1.bf16.msra.mxu0 0
          %731 = vmatprep.subr.bf16.mxu0 0
          %732 = vmatpush1.bf16.msra.mxu0 0
          %733 = vmatprep.mubr.bf16.mxu0 0
          %734 = vmatmul.mubr.bf16.gmra.mrb[0].mxu0 %v699
          %v735 = vpop.f32.mrb[0].mxu0
          %v736 = vadd.f32 0.0, %v735
          %v737 = vpop.f32.mrb[0].mxu0
          %v738 = vpop.f32.mrb[0].mxu0
          %v739 = vpop.f32.mrb[0].mxu0
          %740 = vdwg.mxu0
          %v743 = vunpack.c.l.s4 1966171168
          %v744 = vunpack.c.0.s8 %v743
          %v745 = vlaneseq
          %v746 = vshrl.u32 %v745, 7
          %v747 = vsub.s32 %v744, %v746
          %v748 = vrot.slane %v736, %v747
          %v750 = vunpack.c.l.s4 1966171168
          %v751 = vunpack.c.0.s8 %v750
          %v752 = vlaneseq
          %v753 = vshrl.u32 %v752, 7
          %v754 = vsub.s32 %v751, %v753
          %v755 = vrot.slane %v748, %v754
          %756 = vrot.lane.b32.xlu0 %v755, 64
          %v757 = vpop.permute.xlu0 %756
          %v759 = vlaneseq
          %vm760 = vcmp.ge.s32.totalorder %v759, 64
          %vm761 = vcmp.lt.s32.totalorder %v759, 128
          %vm762 = vmand %vm760, %vm761
          %763 = vst.msk [vmem:[#allocation2] sm:$0x1] %vm762, %v757
          %vm764 = vcmp.ge.s32.totalorder %v759, 0
          %vm765 = vcmp.lt.s32.totalorder %v759, 64
          %vm766 = vmand %vm764, %vm765
          %767 = vst.msk [vmem:[#allocation2 + $0x1] sm:$0x1] %vm766, %v682
        $region76: #{step.2} parent=63 // pred_fallthru
          _
        %v768 = vld [vmem:[#allocation2] sm:$0x3]
        %v770 = vlaneseq
        %v771 = vshrl.u32 %v770, 7
        %v772 = vsub.s32 0, %v771
        %v773 = vrot.slane %v768, %v772
        %v774 = vlaneseq
        %v775 = vshrl.u32 %v774, 7
        %v776 = vsub.s32 1, %v775
        %v777 = vrot.slane %v768, %v776
        %v780 = vpack.c.bf16 %v773, %v773
        %v781 = vpack.c.bf16 %v777, %v777
        %v782 = vld [vmem:[%s413] sm:$0xf]
        %v783 = vld [vmem:[%s413 + $0x4] sm:$0xf]
        %v784 = vld [vmem:[%s413 + $0x8] sm:$0xf]
        %v785 = vld [vmem:[%s413 + $0xc] sm:$0xf]
        %v786 = vld [vmem:[%s413 + $0x10] sm:$0xf]
        %v787 = vld [vmem:[%s413 + $0x14] sm:$0xf]
        %v788 = vld [vmem:[%s413 + $0x18] sm:$0xf]
        %v789 = vld [vmem:[%s413 + $0x1c] sm:$0xf]
        %v790 = vld [vmem:[%s413 + $0x20] sm:$0xf]
        %v791 = vld [vmem:[%s413 + $0x24] sm:$0xf]
        %v792 = vld [vmem:[%s413 + $0x28] sm:$0xf]
        %v793 = vld [vmem:[%s413 + $0x2c] sm:$0xf]
        %v794 = vld [vmem:[%s413 + $0x30] sm:$0xf]
        %v795 = vld [vmem:[%s413 + $0x34] sm:$0xf]
        %v796 = vld [vmem:[%s413 + $0x38] sm:$0xf]
        %v797 = vld [vmem:[%s413 + $0x3c] sm:$0xf]
        %v798 = vld [vmem:[%s413 + $0x40] sm:$0xf]
        %v799 = vld [vmem:[%s413 + $0x44] sm:$0xf]
        %v800 = vld [vmem:[%s413 + $0x48] sm:$0xf]
        %v801 = vld [vmem:[%s413 + $0x4c] sm:$0xf]
        %v802 = vld [vmem:[%s413 + $0x50] sm:$0xf]
        %v803 = vld [vmem:[%s413 + $0x54] sm:$0xf]
        %v804 = vld [vmem:[%s413 + $0x58] sm:$0xf]
        %v805 = vld [vmem:[%s413 + $0x5c] sm:$0xf]
        %v806 = vld [vmem:[%s413 + $0x60] sm:$0xf]
        %v807 = vld [vmem:[%s413 + $0x64] sm:$0xf]
        %v808 = vld [vmem:[%s413 + $0x68] sm:$0xf]
        %v809 = vld [vmem:[%s413 + $0x6c] sm:$0xf]
        %v810 = vld [vmem:[%s413 + $0x70] sm:$0xf]
        %v811 = vld [vmem:[%s413 + $0x74] sm:$0xf]
        %v812 = vld [vmem:[%s413 + $0x78] sm:$0xf]
        %v813 = vld [vmem:[%s413 + $0x7c] sm:$0xf]
        %v814 = vld [vmem:[%s456] sm:$0x1]
        %v847 = vunpack.c.l.b16 %v782
        %v848 = vunpack.c.l.b16 %v783
        %v849 = vunpack.c.l.b16 %v784
        %v850 = vunpack.c.l.b16 %v785
        %v851 = vunpack.c.l.b16 %v786
        %v852 = vunpack.c.l.b16 %v787
        %v853 = vunpack.c.l.b16 %v788
        %v854 = vunpack.c.l.b16 %v789
        %v855 = vunpack.c.l.b16 %v790
        %v856 = vunpack.c.l.b16 %v791
        %v857 = vunpack.c.l.b16 %v792
        %v858 = vunpack.c.l.b16 %v793
        %v859 = vunpack.c.l.b16 %v794
        %v860 = vunpack.c.l.b16 %v795
        %v861 = vunpack.c.l.b16 %v796
        %v862 = vunpack.c.l.b16 %v797
        %v863 = vunpack.c.l.b16 %v798
        %v864 = vunpack.c.l.b16 %v799
        %v865 = vunpack.c.l.b16 %v800
        %v866 = vunpack.c.l.b16 %v801
        %v867 = vunpack.c.l.b16 %v802
        %v868 = vunpack.c.l.b16 %v803
        %v869 = vunpack.c.l.b16 %v804
        %v870 = vunpack.c.l.b16 %v805
        %v871 = vunpack.c.l.b16 %v806
        %v872 = vunpack.c.l.b16 %v807
        %v873 = vunpack.c.l.b16 %v808
        %v874 = vunpack.c.l.b16 %v809
        %v875 = vunpack.c.l.b16 %v810
        %v876 = vunpack.c.l.b16 %v811
        %v877 = vunpack.c.l.b16 %v812
        %v878 = vunpack.c.l.b16 %v813
        %v879 = vpack.c.b16 %v848, %v847
        %v880 = vpack.c.b16 %v850, %v849
        %v881 = vpack.c.b16 %v852, %v851
        %v882 = vpack.c.b16 %v854, %v853
        %v883 = vpack.c.b16 %v856, %v855
        %v884 = vpack.c.b16 %v858, %v857
        %v885 = vpack.c.b16 %v860, %v859
        %v886 = vpack.c.b16 %v862, %v861
        %v887 = vpack.c.b16 %v864, %v863
        %v888 = vpack.c.b16 %v866, %v865
        %v889 = vpack.c.b16 %v868, %v867
        %v890 = vpack.c.b16 %v870, %v869
        %v891 = vpack.c.b16 %v872, %v871
        %v892 = vpack.c.b16 %v874, %v873
        %v893 = vpack.c.b16 %v876, %v875
        %v894 = vpack.c.b16 %v878, %v877
        %911 = vmatprep.subr.bf16.mxu0 0
        %912 = vmatpush1.bf16.msra.mxu0 %v879
        %913 = vmatprep.subr.bf16.mxu0 0
        %914 = vmatpush1.bf16.msra.mxu0 %v880
        %915 = vmatprep.subr.bf16.mxu0 0
        %916 = vmatpush1.bf16.msra.mxu0 %v881
        %917 = vmatprep.subr.bf16.mxu0 0
        %918 = vmatpush1.bf16.msra.mxu0 %v882
        %919 = vmatprep.subr.bf16.mxu0 0
        %920 = vmatpush1.bf16.msra.mxu0 %v883
        %921 = vmatprep.subr.bf16.mxu0 0
        %922 = vmatpush1.bf16.msra.mxu0 %v884
        %923 = vmatprep.subr.bf16.mxu0 0
        %924 = vmatpush1.bf16.msra.mxu0 %v885
        %925 = vmatprep.subr.bf16.mxu0 0
        %926 = vmatpush1.bf16.msra.mxu0 %v886
        %927 = vmatprep.subr.bf16.mxu0 0
        %928 = vmatpush1.bf16.msra.mxu0 %v887
        %929 = vmatprep.subr.bf16.mxu0 0
        %930 = vmatpush1.bf16.msra.mxu0 %v888
        %931 = vmatprep.subr.bf16.mxu0 0
        %932 = vmatpush1.bf16.msra.mxu0 %v889
        %933 = vmatprep.subr.bf16.mxu0 0
        %934 = vmatpush1.bf16.msra.mxu0 %v890
        %935 = vmatprep.subr.bf16.mxu0 0
        %936 = vmatpush1.bf16.msra.mxu0 %v891
        %937 = vmatprep.subr.bf16.mxu0 0
        %938 = vmatpush1.bf16.msra.mxu0 %v892
        %939 = vmatprep.subr.bf16.mxu0 0
        %940 = vmatpush1.bf16.msra.mxu0 %v893
        %941 = vmatprep.subr.bf16.mxu0 0
        %942 = vmatpush1.bf16.msra.mxu0 %v894
        %943 = vmatprep.mubr.bf16.mxu0 %v781
        %944 = vmatmul.mubr.bf16.gmra.mrb[0].mxu0 %v780
        %v945 = vpop.f32.mrb[0].mxu0
        %v946 = vadd.f32 %v814, %v945
        %v947 = vpop.f32.mrb[0].mxu0
        %v948 = vpop.f32.mrb[0].mxu0
        %v949 = vpop.f32.mrb[0].mxu0
        %950 = vdwg.mxu0
        %s951 = smul.u32 %s31, 128
        %s952 = sshra.s32 %s951, 7
        %s953 = sand.u32 %s951, 127
        %s954 = scalar_lea.vmem [#allocation3], %s952
        %v955 = vlaneseq
        %vm956 = vcmp.ge.s32.totalorder %v955, 0
        %vm957 = vcmp.lt.s32.totalorder %v955, 128
        %vm958 = vmand %vm956, %vm957
        %959 = vst.msk [vmem:[%s954] sm:$0x1] %vm958, %v946
        %p960 = scmp.eq.s32.totalorder %s31, 1
        // Predicated region
        $region77: #{step.2} parent=63 // pred_check
          %p961 = pneg %p960
        $region78: #{step.2} parent=63 // pred_check_branch
          %963 = sbr.rel (%p961) target = $region80
        $region79: #{step.2} parent=63 // pred_region
          %v964 = vld [vmem:[#allocation3] sm:$0x3]
          %v965 = vxor.u32 %v964, 2147483648
          %v966 = vmul.f32 %v965, 1.442695
          %v967 = vpow.pop %v966
          %v968 = vadd.f32 %v967, 1.0
          %v969 = vrcp.pop %v968
          %v970 = vmul.f32 1.0, %v969
          %v972 = vrot.slane %v964, 1
          %v974 = vtanh.pop %v972
          %975 = vrot.lane.b32.xlu0 %v964, 64
          %v976 = vpop.permute.xlu0 %975
          %v977 = vrot.slane %v976, 1
          %v979 = vxor.u32 %v977, 2147483648
          %v980 = vmul.f32 %v979, 1.442695
          %v981 = vpow.pop %v980
          %v982 = vadd.f32 %v981, 1.0
          %v983 = vrcp.pop %v982
          %v984 = vmul.f32 1.0, %v983
          %v985 = vld [vmem:[%s3] sm:$0x1]
          %987 = vrot.lane.b32.xlu0 %v985, 64
          %v988 = vpop.permute.xlu0 %987
          %v990 = vmul.f32 %v970, %v988
          %v991 = vmul.f32 %v970, %v974
          %993 = vrot.lane.b32.xlu0 %v991, 64
          %v994 = vpop.permute.xlu0 %993
          %v996 = vadd.f32 %v990, %v994
          %v997 = vtanh.pop %v996
          %999 = vrot.lane.b32.xlu0 %v997, 64
          %v1000 = vpop.permute.xlu0 %999
          %v1002 = vmul.f32 %v984, %v1000
          %vm1003 = vcmask 516096
          %1004 = vst.msk [vmem:[%s12] sm:$0x1] %vm1003, %v1002
          %v1006 = vlaneseq
          %v1007 = vshrl.u32 %v1006, 7
          %v1008 = vsub.s32 0, %v1007
          %v1009 = vrot.slane %v996, %v1008
          %1010 = vrot.lane.b32.xlu0 %v1009, 64
          %v1011 = vpop.permute.xlu0 %1010
          %1013 = vst.msk [vmem:[#allocation9] sm:$0x1] %vm1003, %v1011
          %v1014 = vpack.c.bf16 %v1002, %v1002
          %v1015 = vld [vmem:[%s7] sm:$0xf]
          %v1016 = vld [vmem:[%s7 + $0x4] sm:$0xf]
          %v1017 = vld [vmem:[%s7 + $0x8] sm:$0xf]
          %v1018 = vld [vmem:[%s7 + $0xc] sm:$0xf]
          %v1019 = vld [vmem:[%s7 + $0x10] sm:$0xf]
          %v1020 = vld [vmem:[%s7 + $0x14] sm:$0xf]
          %v1021 = vld [vmem:[%s7 + $0x18] sm:$0xf]
          %v1022 = vld [vmem:[%s7 + $0x1c] sm:$0xf]
          %v1031 = vunpack.c.l.b16 %v1015
          %v1032 = vunpack.c.l.b16 %v1016
          %v1033 = vunpack.c.l.b16 %v1017
          %v1034 = vunpack.c.l.b16 %v1018
          %v1035 = vunpack.c.l.b16 %v1019
          %v1036 = vunpack.c.l.b16 %v1020
          %v1037 = vunpack.c.l.b16 %v1021
          %v1038 = vunpack.c.l.b16 %v1022
          %v1039 = vpack.c.b16 %v1032, %v1031
          %v1040 = vpack.c.b16 %v1034, %v1033
          %v1041 = vpack.c.b16 %v1036, %v1035
          %v1042 = vpack.c.b16 %v1038, %v1037
          %vm1047 = vcmask 523264
          %v1049 = vsel %vm1047, %v1014, 0
          %1051 = vmatprep.subr.bf16.mxu0 0
          %1052 = vmatpush1.bf16.msra.mxu0 %v1039
          %1053 = vmatprep.subr.bf16.mxu0 0
          %1054 = vmatpush1.bf16.msra.mxu0 %v1040
          %1055 = vmatprep.subr.bf16.mxu0 0
          %1056 = vmatpush1.bf16.msra.mxu0 %v1041
          %1057 = vmatprep.subr.bf16.mxu0 0
          %1058 = vmatpush1.bf16.msra.mxu0 %v1042
          %1059 = vmatprep.subr.bf16.mxu0 0
          %1060 = vmatpush1.bf16.msra.mxu0 0
          %1061 = vmatprep.subr.bf16.mxu0 0
          %1062 = vmatpush1.bf16.msra.mxu0 0
          %1063 = vmatprep.subr.bf16.mxu0 0
          %1064 = vmatpush1.bf16.msra.mxu0 0
          %1065 = vmatprep.subr.bf16.mxu0 0
          %1066 = vmatpush1.bf16.msra.mxu0 0
          %1067 = vmatprep.subr.bf16.mxu0 0
          %1068 = vmatpush1.bf16.msra.mxu0 0
          %1069 = vmatprep.subr.bf16.mxu0 0
          %1070 = vmatpush1.bf16.msra.mxu0 0
          %1071 = vmatprep.subr.bf16.mxu0 0
          %1072 = vmatpush1.bf16.msra.mxu0 0
          %1073 = vmatprep.subr.bf16.mxu0 0
          %1074 = vmatpush1.bf16.msra.mxu0 0
          %1075 = vmatprep.subr.bf16.mxu0 0
          %1076 = vmatpush1.bf16.msra.mxu0 0
          %1077 = vmatprep.subr.bf16.mxu0 0
          %1078 = vmatpush1.bf16.msra.mxu0 0
          %1079 = vmatprep.subr.bf16.mxu0 0
          %1080 = vmatpush1.bf16.msra.mxu0 0
          %1081 = vmatprep.subr.bf16.mxu0 0
          %1082 = vmatpush1.bf16.msra.mxu0 0
          %1083 = vmatprep.mubr.bf16.mxu0 0
          %1084 = vmatmul.mubr.bf16.gmra.mrb[0].mxu0 %v1049
          %v1085 = vpop.f32.mrb[0].mxu0
          %v1086 = vadd.f32 0.0, %v1085
          %v1087 = vpop.f32.mrb[0].mxu0
          %v1088 = vpop.f32.mrb[0].mxu0
          %v1089 = vpop.f32.mrb[0].mxu0
          %1090 = vdwg.mxu0
          %vm1091 = vcmask 122880
          %1092 = vst.msk [vmem:[%s14] sm:$0x1] %vm1091, %v1086
        $region80: #{step.2} parent=63 // pred_fallthru
          _
        // Predicated region
        $region81: #{step.2} parent=63 // pred_check
          %p1093 = pneg %p285
        $region82: #{step.2} parent=63 // pred_check_branch
          %1095 = sbr.rel (%p1093) target = $region84
        $region83: #{step.2} parent=63 // pred_region
          _
        $region84: #{step.2} parent=63 // pred_fallthru
          _
        // Predicated region
        $region85: #{step.2} parent=63 // pred_check
          %p1096 = pneg %p306
        $region86: #{step.2} parent=63 // pred_check_branch
          %1098 = sbr.rel (%p1096) target = $region88
        $region87: #{step.2} parent=63 // pred_region
          %s1100 = ssub.s32 16, 16
          %1101 = vsyncadd [#allocation8], %s1100
          %s1103 = sshll.u32 [#allocation9], 4
          %s1104 = int_to_ptr.vmem [resolvable:$true] %s1103
          %1106 = dma.vmem_to_hbm [thread:$0]  %s1104, 16, %s13, [#allocation8]
        $region88: #{step.2} parent=63 // pred_fallthru
          _
        // Predicated region
        $region89: #{step.2} parent=63 // pred_check
          %p1107 = pneg %p327
        $region90: #{step.2} parent=63 // pred_check_branch
          %1109 = sbr.rel (%p1107) target = $region92
        $region91: #{step.2} parent=63 // pred_region
          _
        $region92: #{step.2} parent=63 // pred_fallthru
          _
        // Predicated region
        $region93: #{step.2} parent=63 // pred_check
          %p1110 = pneg %p285
        $region94: #{step.2} parent=63 // pred_check_branch
          %1112 = sbr.rel (%p1110) target = $region96
        $region95: #{step.2} parent=63 // pred_region
          _
        $region96: #{step.2} parent=63 // pred_fallthru
          _
        // Predicated region
        $region97: #{step.2} parent=63 // pred_check
          %p1113 = pneg %p306
        $region98: #{step.2} parent=63 // pred_check_branch
          %1115 = sbr.rel (%p1113) target = $region100
        $region99: #{step.2} parent=63 // pred_region
          %1116 = dma.done [#allocation8], 16
        $region100: #{step.2} parent=63 // pred_fallthru
          _
        // Predicated region
        $region101: #{step.2} parent=63 // pred_check
          %p1117 = pneg %p327
        $region102: #{step.2} parent=63 // pred_check_branch
          %1119 = sbr.rel (%p1117) target = $region104
        $region103: #{step.2} parent=63 // pred_region
          _
        $region104: #{step.2} parent=63 // pred_fallthru
          _
      $region64: #{step.2} parent=5 // pred_fallthru
        _
      %p1120 = scmp.le.s32.totalorder 2, %s26
      // Predicated region
      $region105: #{step.2} parent=5 // pred_check
        %p1121 = pneg %p1120
      $region106: #{step.2} parent=5 // pred_check_branch
        %1123 = sbr.rel (%p1121) target = $region108
      $region107: #{step.2} parent=5 // pred_region
        %s1124 = ssub.s32 %s26, 2
      $region108: #{step.2} parent=5 // pred_fallthru
        _
    $region6: #{step.2} parent=1 // loop_footer
      %s30 = sadd.s32 1, %s26
    $region7: #{step.2} parent=1 // loop_footer_branch
      %25 = sbr.rel target = $region3
    $region8: #{step.2} parent=1 // loop_exit
      _
    %1125 = vsyncpa [#allocation7], 1
    %s1126 = scalar_lea.sflag [#allocation7], 1
    %1127 = vsyncpa %s1126, 1
    %1128 = vsyncpa [#allocation8], 1
    %s1129 = scalar_lea.sflag [#allocation8], 1
    %1130 = vsyncpa %s1129, 1

</llo_original>
